<compile_context>
chip_gen: v7x
topology: tpu7x:2x2x1
jax: 0.10.0
libtpu: 0.0.40
codegen_flags: <defaults>
</compile_context>

<pallas_src>
import functools

import jax
import jax.numpy as jnp
from jax.experimental import pallas as pl
from jax.experimental.pallas import tpu as pltpu

LN_EPS = 1e-5                      # PyTorch nn.LayerNorm default
_VMEM_LIMIT = 48 * 1024 * 1024     # headroom for large row tiles / weight blocks


# ---------------------------------------------------------------------------
# tiling helpers (trace-time, shapes are Python ints)
# ---------------------------------------------------------------------------
def _round_up(x, m):
    return ((x + m - 1) // m) * m


def _spatial_tile(n):
    """Pick (tile, padded_n) for the i/j/k axes of the mix matmul."""
    for t in (256, 128):           # MXU-matched tiles when they divide N
        if n % t == 0:
            return t, n
    if n <= 256:
        return n, n                # full-dim block is always legal
    return 128, _round_up(n, 128)  # pad large, non-aligned N to a 128 multiple


def _hidden_tile(h):
    """Hidden-dim batch per mix grid step (keeps VMEM ~10 MiB at T=256)."""
    for t in (8, 4, 2, 1):
        if h % t == 0:
            return t
    return 1


# ---------------------------------------------------------------------------
# Kernel 1: LayerNorm(x) -> fused 5-way projection -> gates -> masked/gated left,right + og
# ---------------------------------------------------------------------------
def pre_kernel(x_ref, mask_ref, ng_ref, nb_ref, w5_ref, b5_ref,
               left_ref, right_ref, og_ref):
    x = x_ref[...].astype(jnp.float32)                       # (TM, D)
    mu = jnp.mean(x, axis=-1, keepdims=True)
    xc = x - mu
    var = jnp.mean(xc * xc, axis=-1, keepdims=True)
    xn = xc * jax.lax.rsqrt(var + LN_EPS)
    xn = xn * ng_ref[...] + nb_ref[...]                      # (TM, D) f32

    # One wide MXU pass instead of five narrow ones (bf16 operands, f32 accumulation).
    proj = jnp.dot(xn.astype(jnp.bfloat16), w5_ref[...],
                   preferred_element_type=jnp.float32) + b5_ref[...]

    H = left_ref.shape[-1]
    left = proj[:, 0 * H:1 * H]
    right = proj[:, 1 * H:2 * H]
    lg = jax.nn.sigmoid(proj[:, 2 * H:3 * H])
    rg = jax.nn.sigmoid(proj[:, 3 * H:4 * H])
    og = jax.nn.sigmoid(proj[:, 4 * H:5 * H])

    m = mask_ref[...]                                        # (TM, 1); ones when mask is None
    left_ref[...] = (left * m * lg).astype(left_ref.dtype)   # bf16 store
    right_ref[...] = (right * m * rg).astype(right_ref.dtype)
    og_ref[...] = og.astype(og_ref.dtype)                    # bf16 store


# ---------------------------------------------------------------------------
# Kernel 2: tiled triangle mix.  Per (b, h-tile, i-tile, j-tile) accumulate over k-tiles:
#   acc[d, i, j] += sum_k a[d, i, k] * b[d, k, j]   (bf16 inputs, f32 MXU accumulation)
# ---------------------------------------------------------------------------
def mix_kernel(a_ref, b_ref, o_ref, acc_ref):
    @pl.when(pl.program_id(4) == 0)
    def _():
        acc_ref[...] = jnp.zeros_like(acc_ref)

    acc_ref[...] += jax.lax.dot_general(
        a_ref[...], b_ref[...],                              # (TH, TI, TK), (TH, TK, TJ) bf16
        dimension_numbers=(((2,), (1,)), ((0,), (0,))),
        preferred_element_type=jnp.float32)

    @pl.when(pl.program_id(4) == pl.num_programs(4) - 1)
    def _():
        o_ref[...] = acc_ref[...].astype(o_ref.dtype)        # bf16 store


# ---------------------------------------------------------------------------
# Kernel 3: LayerNorm(mixed) * out_gate -> to_out Linear
# ---------------------------------------------------------------------------
def post_kernel(m_ref, og_ref, g_ref, b_ref, wo_ref, bo_ref, o_ref):
    m = m_ref[...].astype(jnp.float32)                       # (TM, H)
    mu = jnp.mean(m, axis=-1, keepdims=True)
    mc = m - mu
    var = jnp.mean(mc * mc, axis=-1, keepdims=True)
    mn = mc * jax.lax.rsqrt(var + LN_EPS) * g_ref[...] + b_ref[...]
    mn = mn * og_ref[...]                                    # bf16 gate promotes to f32
    out = jnp.dot(mn.astype(jnp.bfloat16), wo_ref[...],
                  preferred_element_type=jnp.float32) + bo_ref[...]
    o_ref[...] = out.astype(o_ref.dtype)


# ---------------------------------------------------------------------------
# Wrapper
# ---------------------------------------------------------------------------
@functools.partial(jax.jit, static_argnames=("mix",))
def triangle_multiplicative_forward(x, params, mask=None, mix="ingoing"):
    """x: (B, N, N, D) float32, mask: optional (B, N, N); returns (B, N, N, D) float32."""
    B, N, N2, D = x.shape
    assert N == N2, "feature map must be symmetrical"
    H = params["w_left"].shape[1]
    R = B * N * N

    # ---- row tiling (pre/post kernels), padded instead of a whole-tensor fallback ----
    TM = 2048 if R >= 2048 else _round_up(R, 8)
    Rp = _round_up(R, TM)

    x2 = x.reshape(R, D)
    if mask is None:
        mask2 = jnp.ones((R, 1), jnp.float32)
    else:
        mask2 = mask.reshape(R, 1).astype(jnp.float32)
    if Rp != R:
        x2 = jnp.pad(x2, ((0, Rp - R), (0, 0)))
        mask2 = jnp.pad(mask2, ((0, Rp - R), (0, 0)))

    # fuse the five projections into one (D, 5H) weight / (1, 5H) bias; weights feed the MXU
    # as bf16 (f32 accumulation), biases stay f32.
    w5 = jnp.concatenate([params["w_left"], params["w_right"],
                          params["w_lg"], params["w_rg"], params["w_og"]],
                         axis=1).astype(jnp.bfloat16)
    b5 = jnp.concatenate([params["b_left"], params["b_right"],
                          params["b_lg"], params["b_rg"], params["b_og"]], axis=1)
    w_out = params["w_out"].astype(jnp.bfloat16)

    row = lambda c: pl.BlockSpec((TM, c), lambda i: (i, 0))
    full = lambda r, c: pl.BlockSpec((r, c), lambda i: (0, 0))

    left_f, right_f, og_f = pl.pallas_call(
        pre_kernel,
        out_shape=(jax.ShapeDtypeStruct((Rp, H), jnp.bfloat16),
                   jax.ShapeDtypeStruct((Rp, H), jnp.bfloat16),
                   jax.ShapeDtypeStruct((Rp, H), jnp.bfloat16)),
        grid=(Rp // TM,),
        in_specs=[row(D), row(1), full(1, D), full(1, D), full(D, 5 * H), full(1, 5 * H)],
        out_specs=[row(H), row(H), row(H)],
        compiler_params=pltpu.CompilerParams(dimension_semantics=("parallel",),
                                             vmem_limit_bytes=_VMEM_LIMIT),
    )(x2, mask2, params["norm_g"], params["norm_b"], w5, b5)

    left = left_f[:R].reshape(B, N, N, H)     # bf16
    right = right_f[:R].reshape(B, N, N, H)   # bf16

    # TODO(synk): fuse these relayouts into the pre/post kernels (emit (B,H,N,N) blocks directly
    # via in-kernel relayout) to drop the remaining XLA transpose passes; all transposed tensors
    # are bf16 so each pass already moves half the bytes of the f32 version.
    if mix == "ingoing":
        # out[b,i,j,d] = sum_k left[b,k,j,d] * right[b,k,i,d]
        a = jnp.transpose(right, (0, 3, 2, 1))   # [b, d, i, k]
        bm = jnp.transpose(left, (0, 3, 1, 2))   # [b, d, k, j]
    elif mix == "outgoing":
        # out[b,i,j,d] = sum_k left[b,i,k,d] * right[b,j,k,d]
        a = jnp.transpose(left, (0, 3, 1, 2))    # [b, d, i, k]
        bm = jnp.transpose(right, (0, 3, 2, 1))  # [b, d, k, j]
    else:
        raise ValueError("mix must be either ingoing or outgoing")

    # ---- tiled mix matmul ----
    T, Np = _spatial_tile(N)
    if Np != N:
        pad = Np - N
        a = jnp.pad(a, ((0, 0), (0, 0), (0, pad), (0, pad)))
        bm = jnp.pad(bm, ((0, 0), (0, 0), (0, pad), (0, pad)))
    TH = _hidden_tile(H)

    mixed_t = pl.pallas_call(
        mix_kernel,
        out_shape=jax.ShapeDtypeStruct((B, H, Np, Np), jnp.bfloat16),
        grid=(B, H // TH, Np // T, Np // T, Np // T),
        in_specs=[pl.BlockSpec((None, TH, T, T), lambda b, h, i, j, k: (b, h, i, k)),
                  pl.BlockSpec((None, TH, T, T), lambda b, h, i, j, k: (b, h, k, j))],
        out_specs=pl.BlockSpec((None, TH, T, T), lambda b, h, i, j, k: (b, h, i, j)),
        scratch_shapes=[pltpu.VMEM((TH, T, T), jnp.float32)],
        compiler_params=pltpu.CompilerParams(
            dimension_semantics=("parallel", "parallel", "parallel", "parallel", "arbitrary"),
            vmem_limit_bytes=_VMEM_LIMIT),
    )(a, bm)

    if Np != N:
        mixed_t = mixed_t[:, :, :N, :N]
    mixed = jnp.transpose(mixed_t, (0, 2, 3, 1)).reshape(R, H)   # back to (b, i, j, d) rows
    if Rp != R:
        mixed = jnp.pad(mixed, ((0, Rp - R), (0, 0)))

    out_f = pl.pallas_call(
        post_kernel,
        out_shape=jax.ShapeDtypeStruct((Rp, D), jnp.float32),
        grid=(Rp // TM,),
        in_specs=[row(H), row(H), full(1, H), full(1, H), full(H, D), full(1, D)],
        out_specs=row(D),
        compiler_params=pltpu.CompilerParams(dimension_semantics=("parallel",),
                                             vmem_limit_bytes=_VMEM_LIMIT),
    )(mixed, og_f, params["out_norm_g"], params["out_norm_b"], w_out, params["b_out"])

    # TODO(synk): pad D/H to multiples of 128 on-device when the model uses lane-narrow dims
    # (e.g. 32 in this demo) to avoid masked vst.msk partial stores in the row kernels.
    return out_f[:R].reshape(B, N, N, D)


# ---------------------------------------------------------------------------
# Deterministic parameter init (mirrors the PyTorch __init__ shapes / constants)
# ---------------------------------------------------------------------------
def init_params(key, dim, hidden_dim):
    ks = jax.random.split(key, 6)
    s = 0.05
    return {
        "norm_g": jnp.ones((1, dim), jnp.float32),
        "norm_b": jnp.zeros((1, dim), jnp.float32),
        "w_left": jax.random.normal(ks[0], (dim, hidden_dim), jnp.float32) * s,
        "b_left": jax.random.normal(ks[1], (1, hidden_dim), jnp.float32) * s,
        "w_right": jax.random.normal(ks[2], (dim, hidden_dim), jnp.float32) * s,
        "b_right": jax.random.normal(ks[3], (1, hidden_dim), jnp.float32) * s,
        # gates: weight=0, bias=1 exactly as nn.init.constant_ in the module
        "w_lg": jnp.zeros((dim, hidden_dim), jnp.float32),
        "b_lg": jnp.ones((1, hidden_dim), jnp.float32),
        "w_rg": jnp.zeros((dim, hidden_dim), jnp.float32),
        "b_rg": jnp.ones((1, hidden_dim), jnp.float32),
        "w_og": jnp.zeros((dim, hidden_dim), jnp.float32),
        "b_og": jnp.ones((1, hidden_dim), jnp.float32),
        "out_norm_g": jnp.ones((1, hidden_dim), jnp.float32),
        "out_norm_b": jnp.zeros((1, hidden_dim), jnp.float32),
        "w_out": jax.random.normal(ks[4], (hidden_dim, dim), jnp.float32) * s,
        "b_out": jax.random.normal(ks[5], (1, dim), jnp.float32) * s,
    }


# ---------------------------------------------------------------------------
# Pure-JAX f32 reference (mirrors the PyTorch forward)
# ---------------------------------------------------------------------------
def reference_forward(x, p, mask=None, mix="ingoing"):
    def ln(v, g, b):
        mu = v.mean(-1, keepdims=True)
        var = ((v - mu) ** 2).mean(-1, keepdims=True)
        return (v - mu) / jnp.sqrt(var + LN_EPS) * g.reshape(-1) + b.reshape(-1)

    xn = ln(x, p["norm_g"], p["norm_b"])
    left = xn @ p["w_left"] + p["b_left"].reshape(-1)
    right = xn @ p["w_right"] + p["b_right"].reshape(-1)
    if mask is not None:
        left = left * mask[..., None]
        right = right * mask[..., None]
    lg = jax.nn.sigmoid(xn @ p["w_lg"] + p["b_lg"].reshape(-1))
    rg = jax.nn.sigmoid(xn @ p["w_rg"] + p["b_rg"].reshape(-1))
    og = jax.nn.sigmoid(xn @ p["w_og"] + p["b_og"].reshape(-1))
    left = left * lg
    right = right * rg
    if mix == "ingoing":
        out = jnp.einsum("bkjd,bkid->bijd", left, right)
    else:
        out = jnp.einsum("bikd,bjkd->bijd", left, right)
    out = ln(out, p["out_norm_g"], p["out_norm_b"])
    out = out * og
    return out @ p["w_out"] + p["b_out"].reshape(-1)


if __name__ == "__main__":
    B, N, DIM, HIDDEN = 2, 8, 32, 32
    key = jax.random.PRNGKey(0)
    kx, kp, km = jax.random.split(key, 3)
    x = jax.random.normal(kx, (B, N, N, DIM), jnp.float32)
    params = init_params(kp, DIM, HIDDEN)
    mask = (jax.random.uniform(km, (B, N, N)) > 0.3).astype(jnp.float32)

    # left/right/og/mixed travel between kernels as bf16 and the MXU runs bf16 x bf16 -> f32,
    # so compare against the all-f32 reference with a bf16-appropriate tolerance.
    def check(out, ref, tag):
        assert out.shape == ref.shape, (tag, out.shape, ref.shape)
        err = float(jnp.max(jnp.abs(out - ref)))
        assert jnp.allclose(out, ref, atol=3e-2, rtol=3e-2), (tag, err)

    out = jax.block_until_ready(triangle_multiplicative_forward(x, params, mix="ingoing"))
    check(out, reference_forward(x, params, mix="ingoing"), "ingoing")

    out = jax.block_until_ready(triangle_multiplicative_forward(x, params, mix="outgoing"))
    check(out, reference_forward(x, params, mix="outgoing"), "outgoing")

    out = jax.block_until_ready(
        triangle_multiplicative_forward(x, params, mask=mask, mix="ingoing"))
    check(out, reference_forward(x, params, mask=mask, mix="ingoing"), "ingoing+mask")

    print("KERNEL_OK")
</pallas_src>

<mosaic_0001>
module attributes {stable_mosaic.version = 11 : i64} {
  func.func @mix_kernel(%arg0: i32, %arg1: i32, %arg2: i32, %arg3: i32, %arg4: i32, %arg5: memref<1x8x8x8xbf16, #tpu.memory_space<vmem>>, %arg6: memref<1x8x8x8xbf16, #tpu.memory_space<vmem>>, %arg7: memref<1x8x8x8xbf16, #tpu.memory_space<vmem>>, %arg8: memref<8x8x8xf32, #tpu.memory_space<vmem>>) attributes {dimension_semantics = [#tpu.dimension_semantics<parallel>, #tpu.dimension_semantics<parallel>, #tpu.dimension_semantics<parallel>, #tpu.dimension_semantics<parallel>, #tpu.dimension_semantics<arbitrary>], iteration_bounds = array<i64: 2, 4, 1, 1, 1>, scalar_prefetch = 0 : i64, scratch_operands = 1 : i64, tpu.core_type = #tpu.core_type<tc>, window_params = [{transform_indices = @transform_0, window_bounds = array<i64: 1, 8, 8, 8>}, {transform_indices = @transform_1, window_bounds = array<i64: 1, 8, 8, 8>}, {transform_indices = @transform_2, window_bounds = array<i64: 1, 8, 8, 8>}]} {
    %c0_i32 = arith.constant 0 : i32
    %0 = arith.cmpi eq, %arg4, %c0_i32 : i32
    %1 = arith.extui %0 : i1 to i32
    %c0_i32_0 = arith.constant 0 : i32
    %2 = arith.cmpi ne, %1, %c0_i32_0 : i32
    scf.if %2 {
      %cst_16 = arith.constant 0.000000e+00 : f32
      %14 = vector.broadcast %cst_16 : f32 to vector<8x8x8xf32>
      %c0_17 = arith.constant 0 : index
      %c0_18 = arith.constant 0 : index
      %c0_19 = arith.constant 0 : index
      %15 = vector.load %arg8[%c0_17, %c0_18, %c0_19] : memref<8x8x8xf32, #tpu.memory_space<vmem>>, vector<8x8x8xf32>
      tpu.vector_store %arg8[%c0_17, %c0_18, %c0_19], %14 {strides = array<i32>} : memref<8x8x8xf32, #tpu.memory_space<vmem>>, vector<8x8x8xf32>,
    } else {
    }
    %c0 = arith.constant 0 : index
    %c0_1 = arith.constant 0 : index
    %c0_2 = arith.constant 0 : index
    %3 = vector.load %arg8[%c0, %c0_1, %c0_2] : memref<8x8x8xf32, #tpu.memory_space<vmem>>, vector<8x8x8xf32>
    %c0_3 = arith.constant 0 : index
    %c0_4 = arith.constant 0 : index
    %c0_5 = arith.constant 0 : index
    %c0_6 = arith.constant 0 : index
    %4 = vector.load %arg5[%c0_3, %c0_4, %c0_5, %c0_6] : memref<1x8x8x8xbf16, #tpu.memory_space<vmem>>, vector<1x8x8x8xbf16>
    %5 = vector.shape_cast %4 : vector<1x8x8x8xbf16> to vector<8x8x8xbf16>
    %c0_7 = arith.constant 0 : index
    %c0_8 = arith.constant 0 : index
    %c0_9 = arith.constant 0 : index
    %c0_10 = arith.constant 0 : index
    %6 = vector.load %arg6[%c0_7, %c0_8, %c0_9, %c0_10] : memref<1x8x8x8xbf16, #tpu.memory_space<vmem>>, vector<1x8x8x8xbf16>
    %7 = vector.shape_cast %6 : vector<1x8x8x8xbf16> to vector<8x8x8xbf16>
    %cst = arith.constant dense<0.000000e+00> : vector<8x8x8xf32>
    %8 = tpu.matmul %5, %7, %cst {dimension_numbers = #tpu.dot_dimension_numbers<[2], [1], [1], [2], [0, 0, 0, 1, 1, 2], [0], [0]>} : vector<8x8x8xbf16>, vector<8x8x8xbf16>, vector<8x8x8xf32> -> vector<8x8x8xf32>
    %9 = arith.addf %3, %8 : vector<8x8x8xf32>
    %c0_11 = arith.constant 0 : index
    %c0_12 = arith.constant 0 : index
    %c0_13 = arith.constant 0 : index
    %10 = vector.load %arg8[%c0_11, %c0_12, %c0_13] : memref<8x8x8xf32, #tpu.memory_space<vmem>>, vector<8x8x8xf32>
    tpu.vector_store %arg8[%c0_11, %c0_12, %c0_13], %9 {strides = array<i32>} : memref<8x8x8xf32, #tpu.memory_space<vmem>>, vector<8x8x8xf32>,
    %c0_i32_14 = arith.constant 0 : i32
    %11 = arith.cmpi eq, %arg4, %c0_i32_14 : i32
    %12 = arith.extui %11 : i1 to i32
    %c0_i32_15 = arith.constant 0 : i32
    %13 = arith.cmpi ne, %12, %c0_i32_15 : i32
    scf.if %13 {
      %c0_16 = arith.constant 0 : index
      %c0_17 = arith.constant 0 : index
      %c0_18 = arith.constant 0 : index
      %14 = vector.load %arg8[%c0_16, %c0_17, %c0_18] : memref<8x8x8xf32, #tpu.memory_space<vmem>>, vector<8x8x8xf32>
      %15 = arith.truncf %14 : vector<8x8x8xf32> to vector<8x8x8xbf16>
      %c0_19 = arith.constant 0 : index
      %c0_20 = arith.constant 0 : index
      %c0_21 = arith.constant 0 : index
      %c0_22 = arith.constant 0 : index
      %16 = vector.load %arg7[%c0_19, %c0_20, %c0_21, %c0_22] : memref<1x8x8x8xbf16, #tpu.memory_space<vmem>>, vector<1x8x8x8xbf16>
      %17 = vector.shape_cast %16 : vector<1x8x8x8xbf16> to vector<8x8x8xbf16>
      %18 = vector.shape_cast %15 : vector<8x8x8xbf16> to vector<1x8x8x8xbf16>
      tpu.vector_store %arg7[%c0_19, %c0_20, %c0_21, %c0_22], %18 {strides = array<i32>} : memref<1x8x8x8xbf16, #tpu.memory_space<vmem>>, vector<1x8x8x8xbf16>,
    } else {
    }
    return
  }
  func.func @transform_0(%arg0: i32, %arg1: i32, %arg2: i32, %arg3: i32, %arg4: i32) -> (i32, i32, i32, i32) {
    %c0_i32 = arith.constant 0 : i32
    return %arg0, %arg1, %arg2, %arg4 : i32, i32, i32, i32
  }
  func.func @transform_1(%arg0: i32, %arg1: i32, %arg2: i32, %arg3: i32, %arg4: i32) -> (i32, i32, i32, i32) {
    %c0_i32 = arith.constant 0 : i32
    return %arg0, %arg1, %arg4, %arg3 : i32, i32, i32, i32
  }
  func.func @transform_2(%arg0: i32, %arg1: i32, %arg2: i32, %arg3: i32, %arg4: i32) -> (i32, i32, i32, i32) {
    %c0_i32 = arith.constant 0 : i32
    return %arg0, %arg1, %arg2, %arg3 : i32, i32, i32, i32
  }
}

module attributes {stable_mosaic.version = 11 : i64} {
  func.func @pre_kernel(%arg0: i32, %arg1: memref<128x32xf32, #tpu.memory_space<vmem>>, %arg2: memref<128x1xf32, #tpu.memory_space<vmem>>, %arg3: memref<1x32xf32, #tpu.memory_space<vmem>>, %arg4: memref<1x32xf32, #tpu.memory_space<vmem>>, %arg5: memref<32x160xbf16, #tpu.memory_space<vmem>>, %arg6: memref<1x160xf32, #tpu.memory_space<vmem>>, %arg7: memref<128x32xbf16, #tpu.memory_space<vmem>>, %arg8: memref<128x32xbf16, #tpu.memory_space<vmem>>, %arg9: memref<128x32xbf16, #tpu.memory_space<vmem>>) attributes {dimension_semantics = [#tpu.dimension_semantics<parallel>], iteration_bounds = array<i64: 1>, scalar_prefetch = 0 : i64, scratch_operands = 0 : i64, tpu.core_type = #tpu.core_type<tc>, window_params = [{transform_indices = @transform_0, window_bounds = array<i64: 128, 32>}, {transform_indices = @transform_1, window_bounds = array<i64: 128, 1>}, {pipeline_mode = #tpu.pipeline_mode<synchronous>, transform_indices = @transform_2, window_bounds = array<i64: 1, 32>}, {pipeline_mode = #tpu.pipeline_mode<synchronous>, transform_indices = @transform_3, window_bounds = array<i64: 1, 32>}, {pipeline_mode = #tpu.pipeline_mode<synchronous>, transform_indices = @transform_4, window_bounds = array<i64: 32, 160>}, {pipeline_mode = #tpu.pipeline_mode<synchronous>, transform_indices = @transform_5, window_bounds = array<i64: 1, 160>}, {transform_indices = @transform_6, window_bounds = array<i64: 128, 32>}, {transform_indices = @transform_7, window_bounds = array<i64: 128, 32>}, {transform_indices = @transform_8, window_bounds = array<i64: 128, 32>}]} {
    %c0 = arith.constant 0 : index
    %c0_0 = arith.constant 0 : index
    %0 = vector.load %arg1[%c0, %c0_0] : memref<128x32xf32, #tpu.memory_space<vmem>>, vector<128x32xf32>
    %cst = arith.constant dense<0.000000e+00> : vector<128xf32>
    %1 = vector.multi_reduction <add>, %0, %cst [1] : vector<128x32xf32> to vector<128xf32>
    %2 = vector.shape_cast %1 : vector<128xf32> to vector<128x1xf32>
    %cst_1 = arith.constant 3.200000e+01 : f32
    %3 = vector.broadcast %cst_1 : f32 to vector<128x1xf32>
    %4 = arith.divf %2, %3 : vector<128x1xf32>
    %5 = vector.broadcast %4 : vector<128x1xf32> to vector<128x32xf32>
    %6 = arith.subf %0, %5 : vector<128x32xf32>
    %7 = arith.mulf %6, %6 : vector<128x32xf32>
    %cst_2 = arith.constant dense<0.000000e+00> : vector<128xf32>
    %8 = vector.multi_reduction <add>, %7, %cst_2 [1] : vector<128x32xf32> to vector<128xf32>
    %9 = vector.shape_cast %8 : vector<128xf32> to vector<128x1xf32>
    %cst_3 = arith.constant 3.200000e+01 : f32
    %10 = vector.broadcast %cst_3 : f32 to vector<128x1xf32>
    %11 = arith.divf %9, %10 : vector<128x1xf32>
    %cst_4 = arith.constant 9.99999974E-6 : f32
    %12 = vector.broadcast %cst_4 : f32 to vector<128x1xf32>
    %13 = arith.addf %11, %12 : vector<128x1xf32>
    %14 = math.rsqrt %13 : vector<128x1xf32>
    %15 = vector.broadcast %14 : vector<128x1xf32> to vector<128x32xf32>
    %16 = arith.mulf %6, %15 : vector<128x32xf32>
    %c0_5 = arith.constant 0 : index
    %c0_6 = arith.constant 0 : index
    %17 = vector.load %arg3[%c0_5, %c0_6] : memref<1x32xf32, #tpu.memory_space<vmem>>, vector<1x32xf32>
    %18 = vector.broadcast %17 : vector<1x32xf32> to vector<128x32xf32>
    %19 = arith.mulf %16, %18 : vector<128x32xf32>
    %c0_7 = arith.constant 0 : index
    %c0_8 = arith.constant 0 : index
    %20 = vector.load %arg4[%c0_7, %c0_8] : memref<1x32xf32, #tpu.memory_space<vmem>>, vector<1x32xf32>
    %21 = vector.broadcast %20 : vector<1x32xf32> to vector<128x32xf32>
    %22 = arith.addf %19, %21 : vector<128x32xf32>
    %23 = arith.truncf %22 : vector<128x32xf32> to vector<128x32xbf16>
    %c0_9 = arith.constant 0 : index
    %c0_10 = arith.constant 0 : index
    %24 = vector.load %arg5[%c0_9, %c0_10] : memref<32x160xbf16, #tpu.memory_space<vmem>>, vector<32x160xbf16>
    %cst_11 = arith.constant dense<0.000000e+00> : vector<128x160xf32>
    %25 = tpu.matmul %23, %24, %cst_11 {dimension_numbers = #tpu.dot_dimension_numbers<[1], [0], [0], [1], [0, 0, 1, 1], [], []>} : vector<128x32xbf16>, vector<32x160xbf16>, vector<128x160xf32> -> vector<128x160xf32>
    %c0_12 = arith.constant 0 : index
    %c0_13 = arith.constant 0 : index
    %26 = vector.load %arg6[%c0_12, %c0_13] : memref<1x160xf32, #tpu.memory_space<vmem>>, vector<1x160xf32>
    %27 = vector.broadcast %26 : vector<1x160xf32> to vector<128x160xf32>
    %28 = arith.addf %25, %27 : vector<128x160xf32>
    %29 = vector.extract_strided_slice %28 {offsets = [0, 0], sizes = [128, 32], strides = [1, 1]} : vector<128x160xf32> to vector<128x32xf32>
    %30 = vector.extract_strided_slice %28 {offsets = [0, 32], sizes = [128, 32], strides = [1, 1]} : vector<128x160xf32> to vector<128x32xf32>
    %31 = vector.extract_strided_slice %28 {offsets = [0, 64], sizes = [128, 32], strides = [1, 1]} : vector<128x160xf32> to vector<128x32xf32>
    %32 = arith.negf %31 : vector<128x32xf32>
    %33 = math.exp %32 : vector<128x32xf32>
    %cst_14 = arith.constant 1.000000e+00 : f32
    %34 = vector.broadcast %cst_14 : f32 to vector<128x32xf32>
    %35 = arith.addf %34, %33 : vector<128x32xf32>
    %36 = arith.divf %34, %35 : vector<128x32xf32>
    %37 = vector.extract_strided_slice %28 {offsets = [0, 96], sizes = [128, 32], strides = [1, 1]} : vector<128x160xf32> to vector<128x32xf32>
    %38 = arith.negf %37 : vector<128x32xf32>
    %39 = math.exp %38 : vector<128x32xf32>
    %cst_15 = arith.constant 1.000000e+00 : f32
    %40 = vector.broadcast %cst_15 : f32 to vector<128x32xf32>
    %41 = arith.addf %40, %39 : vector<128x32xf32>
    %42 = arith.divf %40, %41 : vector<128x32xf32>
    %43 = vector.extract_strided_slice %28 {offsets = [0, 128], sizes = [128, 32], strides = [1, 1]} : vector<128x160xf32> to vector<128x32xf32>
    %44 = arith.negf %43 : vector<128x32xf32>
    %45 = math.exp %44 : vector<128x32xf32>
    %cst_16 = arith.constant 1.000000e+00 : f32
    %46 = vector.broadcast %cst_16 : f32 to vector<128x32xf32>
    %47 = arith.addf %46, %45 : vector<128x32xf32>
    %48 = arith.divf %46, %47 : vector<128x32xf32>
    %c0_17 = arith.constant 0 : index
    %c0_18 = arith.constant 0 : index
    %49 = vector.load %arg2[%c0_17, %c0_18] : memref<128x1xf32, #tpu.memory_space<vmem>>, vector<128x1xf32>
    %50 = vector.broadcast %49 : vector<128x1xf32> to vector<128x32xf32>
    %51 = arith.mulf %29, %50 : vector<128x32xf32>
    %52 = arith.mulf %51, %36 : vector<128x32xf32>
    %53 = arith.truncf %52 : vector<128x32xf32> to vector<128x32xbf16>
    %c0_19 = arith.constant 0 : index
    %c0_20 = arith.constant 0 : index
    %54 = vector.load %arg7[%c0_19, %c0_20] : memref<128x32xbf16, #tpu.memory_space<vmem>>, vector<128x32xbf16>
    tpu.vector_store %arg7[%c0_19, %c0_20], %53 {strides = array<i32>} : memref<128x32xbf16, #tpu.memory_space<vmem>>, vector<128x32xbf16>,
    %55 = vector.broadcast %49 : vector<128x1xf32> to vector<128x32xf32>
    %56 = arith.mulf %30, %55 : vector<128x32xf32>
    %57 = arith.mulf %56, %42 : vector<128x32xf32>
    %58 = arith.truncf %57 : vector<128x32xf32> to vector<128x32xbf16>
    %c0_21 = arith.constant 0 : index
    %c0_22 = arith.constant 0 : index
    %59 = vector.load %arg8[%c0_21, %c0_22] : memref<128x32xbf16, #tpu.memory_space<vmem>>, vector<128x32xbf16>
    tpu.vector_store %arg8[%c0_21, %c0_22], %58 {strides = array<i32>} : memref<128x32xbf16, #tpu.memory_space<vmem>>, vector<128x32xbf16>,
    %60 = arith.truncf %48 : vector<128x32xf32> to vector<128x32xbf16>
    %c0_23 = arith.constant 0 : index
    %c0_24 = arith.constant 0 : index
    %61 = vector.load %arg9[%c0_23, %c0_24] : memref<128x32xbf16, #tpu.memory_space<vmem>>, vector<128x32xbf16>
    tpu.vector_store %arg9[%c0_23, %c0_24], %60 {strides = array<i32>} : memref<128x32xbf16, #tpu.memory_space<vmem>>, vector<128x32xbf16>,
    return
  }
  func.func @transform_0(%arg0: i32) -> (i32, i32) {
    %c0_i32 = arith.constant 0 : i32
    %c0_i32_0 = arith.constant 0 : i32
    return %arg0, %c0_i32 : i32, i32
  }
  func.func @transform_1(%arg0: i32) -> (i32, i32) {
    %c0_i32 = arith.constant 0 : i32
    %c0_i32_0 = arith.constant 0 : i32
    return %arg0, %c0_i32 : i32, i32
  }
  func.func @transform_2(%arg0: i32) -> (i32, i32) {
    %c0_i32 = arith.constant 0 : i32
    %c0_i32_0 = arith.constant 0 : i32
    %c0_i32_1 = arith.constant 0 : i32
    return %c0_i32, %c0_i32_0 : i32, i32
  }
  func.func @transform_3(%arg0: i32) -> (i32, i32) {
    %c0_i32 = arith.constant 0 : i32
    %c0_i32_0 = arith.constant 0 : i32
    %c0_i32_1 = arith.constant 0 : i32
    return %c0_i32, %c0_i32_0 : i32, i32
  }
  func.func @transform_4(%arg0: i32) -> (i32, i32) {
    %c0_i32 = arith.constant 0 : i32
    %c0_i32_0 = arith.constant 0 : i32
    %c0_i32_1 = arith.constant 0 : i32
    return %c0_i32, %c0_i32_0 : i32, i32
  }
  func.func @transform_5(%arg0: i32) -> (i32, i32) {
    %c0_i32 = arith.constant 0 : i32
    %c0_i32_0 = arith.constant 0 : i32
    %c0_i32_1 = arith.constant 0 : i32
    return %c0_i32, %c0_i32_0 : i32, i32
  }
  func.func @transform_6(%arg0: i32) -> (i32, i32) {
    %c0_i32 = arith.constant 0 : i32
    %c0_i32_0 = arith.constant 0 : i32
    return %arg0, %c0_i32 : i32, i32
  }
  func.func @transform_7(%arg0: i32) -> (i32, i32) {
    %c0_i32 = arith.constant 0 : i32
    %c0_i32_0 = arith.constant 0 : i32
    return %arg0, %c0_i32 : i32, i32
  }
  func.func @transform_8(%arg0: i32) -> (i32, i32) {
    %c0_i32 = arith.constant 0 : i32
    %c0_i32_0 = arith.constant 0 : i32
    return %arg0, %c0_i32 : i32, i32
  }
}

module attributes {stable_mosaic.version = 11 : i64} {
  func.func @post_kernel(%arg0: i32, %arg1: memref<128x32xbf16, #tpu.memory_space<vmem>>, %arg2: memref<128x32xbf16, #tpu.memory_space<vmem>>, %arg3: memref<1x32xf32, #tpu.memory_space<vmem>>, %arg4: memref<1x32xf32, #tpu.memory_space<vmem>>, %arg5: memref<32x32xbf16, #tpu.memory_space<vmem>>, %arg6: memref<1x32xf32, #tpu.memory_space<vmem>>, %arg7: memref<128x32xf32, #tpu.memory_space<vmem>>) attributes {dimension_semantics = [#tpu.dimension_semantics<parallel>], iteration_bounds = array<i64: 1>, scalar_prefetch = 0 : i64, scratch_operands = 0 : i64, tpu.core_type = #tpu.core_type<tc>, window_params = [{transform_indices = @transform_0, window_bounds = array<i64: 128, 32>}, {transform_indices = @transform_1, window_bounds = array<i64: 128, 32>}, {pipeline_mode = #tpu.pipeline_mode<synchronous>, transform_indices = @transform_2, window_bounds = array<i64: 1, 32>}, {pipeline_mode = #tpu.pipeline_mode<synchronous>, transform_indices = @transform_3, window_bounds = array<i64: 1, 32>}, {pipeline_mode = #tpu.pipeline_mode<synchronous>, transform_indices = @transform_4, window_bounds = array<i64: 32, 32>}, {pipeline_mode = #tpu.pipeline_mode<synchronous>, transform_indices = @transform_5, window_bounds = array<i64: 1, 32>}, {transform_indices = @transform_6, window_bounds = array<i64: 128, 32>}]} {
    %c0 = arith.constant 0 : index
    %c0_0 = arith.constant 0 : index
    %0 = vector.load %arg1[%c0, %c0_0] : memref<128x32xbf16, #tpu.memory_space<vmem>>, vector<128x32xbf16>
    %1 = arith.extf %0 : vector<128x32xbf16> to vector<128x32xf32>
    %cst = arith.constant dense<0.000000e+00> : vector<128xf32>
    %2 = vector.multi_reduction <add>, %1, %cst [1] : vector<128x32xf32> to vector<128xf32>
    %3 = vector.shape_cast %2 : vector<128xf32> to vector<128x1xf32>
    %cst_1 = arith.constant 3.200000e+01 : f32
    %4 = vector.broadcast %cst_1 : f32 to vector<128x1xf32>
    %5 = arith.divf %3, %4 : vector<128x1xf32>
    %6 = vector.broadcast %5 : vector<128x1xf32> to vector<128x32xf32>
    %7 = arith.subf %1, %6 : vector<128x32xf32>
    %8 = arith.mulf %7, %7 : vector<128x32xf32>
    %cst_2 = arith.constant dense<0.000000e+00> : vector<128xf32>
    %9 = vector.multi_reduction <add>, %8, %cst_2 [1] : vector<128x32xf32> to vector<128xf32>
    %10 = vector.shape_cast %9 : vector<128xf32> to vector<128x1xf32>
    %cst_3 = arith.constant 3.200000e+01 : f32
    %11 = vector.broadcast %cst_3 : f32 to vector<128x1xf32>
    %12 = arith.divf %10, %11 : vector<128x1xf32>
    %cst_4 = arith.constant 9.99999974E-6 : f32
    %13 = vector.broadcast %cst_4 : f32 to vector<128x1xf32>
    %14 = arith.addf %12, %13 : vector<128x1xf32>
    %15 = math.rsqrt %14 : vector<128x1xf32>
    %16 = vector.broadcast %15 : vector<128x1xf32> to vector<128x32xf32>
    %17 = arith.mulf %7, %16 : vector<128x32xf32>
    %c0_5 = arith.constant 0 : index
    %c0_6 = arith.constant 0 : index
    %18 = vector.load %arg3[%c0_5, %c0_6] : memref<1x32xf32, #tpu.memory_space<vmem>>, vector<1x32xf32>
    %19 = vector.broadcast %18 : vector<1x32xf32> to vector<128x32xf32>
    %20 = arith.mulf %17, %19 : vector<128x32xf32>
    %c0_7 = arith.constant 0 : index
    %c0_8 = arith.constant 0 : index
    %21 = vector.load %arg4[%c0_7, %c0_8] : memref<1x32xf32, #tpu.memory_space<vmem>>, vector<1x32xf32>
    %22 = vector.broadcast %21 : vector<1x32xf32> to vector<128x32xf32>
    %23 = arith.addf %20, %22 : vector<128x32xf32>
    %c0_9 = arith.constant 0 : index
    %c0_10 = arith.constant 0 : index
    %24 = vector.load %arg2[%c0_9, %c0_10] : memref<128x32xbf16, #tpu.memory_space<vmem>>, vector<128x32xbf16>
    %25 = arith.extf %24 : vector<128x32xbf16> to vector<128x32xf32>
    %26 = arith.mulf %23, %25 : vector<128x32xf32>
    %27 = arith.truncf %26 : vector<128x32xf32> to vector<128x32xbf16>
    %c0_11 = arith.constant 0 : index
    %c0_12 = arith.constant 0 : index
    %28 = vector.load %arg5[%c0_11, %c0_12] : memref<32x32xbf16, #tpu.memory_space<vmem>>, vector<32x32xbf16>
    %cst_13 = arith.constant dense<0.000000e+00> : vector<128x32xf32>
    %29 = tpu.matmul %27, %28, %cst_13 {dimension_numbers = #tpu.dot_dimension_numbers<[1], [0], [0], [1], [0, 0, 1, 1], [], []>} : vector<128x32xbf16>, vector<32x32xbf16>, vector<128x32xf32> -> vector<128x32xf32>
    %c0_14 = arith.constant 0 : index
    %c0_15 = arith.constant 0 : index
    %30 = vector.load %arg6[%c0_14, %c0_15] : memref<1x32xf32, #tpu.memory_space<vmem>>, vector<1x32xf32>
    %31 = vector.broadcast %30 : vector<1x32xf32> to vector<128x32xf32>
    %32 = arith.addf %29, %31 : vector<128x32xf32>
    %c0_16 = arith.constant 0 : index
    %c0_17 = arith.constant 0 : index
    %33 = vector.load %arg7[%c0_16, %c0_17] : memref<128x32xf32, #tpu.memory_space<vmem>>, vector<128x32xf32>
    tpu.vector_store %arg7[%c0_16, %c0_17], %32 {strides = array<i32>} : memref<128x32xf32, #tpu.memory_space<vmem>>, vector<128x32xf32>,
    return
  }
  func.func @transform_0(%arg0: i32) -> (i32, i32) {
    %c0_i32 = arith.constant 0 : i32
    %c0_i32_0 = arith.constant 0 : i32
    return %arg0, %c0_i32 : i32, i32
  }
  func.func @transform_1(%arg0: i32) -> (i32, i32) {
    %c0_i32 = arith.constant 0 : i32
    %c0_i32_0 = arith.constant 0 : i32
    return %arg0, %c0_i32 : i32, i32
  }
  func.func @transform_2(%arg0: i32) -> (i32, i32) {
    %c0_i32 = arith.constant 0 : i32
    %c0_i32_0 = arith.constant 0 : i32
    %c0_i32_1 = arith.constant 0 : i32
    return %c0_i32, %c0_i32_0 : i32, i32
  }
  func.func @transform_3(%arg0: i32) -> (i32, i32) {
    %c0_i32 = arith.constant 0 : i32
    %c0_i32_0 = arith.constant 0 : i32
    %c0_i32_1 = arith.constant 0 : i32
    return %c0_i32, %c0_i32_0 : i32, i32
  }
  func.func @transform_4(%arg0: i32) -> (i32, i32) {
    %c0_i32 = arith.constant 0 : i32
    %c0_i32_0 = arith.constant 0 : i32
    %c0_i32_1 = arith.constant 0 : i32
    return %c0_i32, %c0_i32_0 : i32, i32
  }
  func.func @transform_5(%arg0: i32) -> (i32, i32) {
    %c0_i32 = arith.constant 0 : i32
    %c0_i32_0 = arith.constant 0 : i32
    %c0_i32_1 = arith.constant 0 : i32
    return %c0_i32, %c0_i32_0 : i32, i32
  }
  func.func @transform_6(%arg0: i32) -> (i32, i32) {
    %c0_i32 = arith.constant 0 : i32
    %c0_i32_0 = arith.constant 0 : i32
    return %arg0, %c0_i32 : i32, i32
  }
}

</mosaic_0001>

<llo_original>
// kernel: triangle_multiplicative_forward.4
$region0: #{triangle_multiplicative_forward.4}
  #allocation0 [shape = 'u32[]', space=smem, size = 0x4, offset = 0x4, fixed_abs, tag = 'smem constant byte address 0x4 - core index']
  #allocation1 [shape = 'u32[144,128]{1,0:T(1,128)}', space=vmem, size = 0x12000, scoped, tag = 'internal scratch']
  #allocation2 [shape = 'f32[8,8,8]{2,1,0:T(8,128)}', space=vmem, size = 0x8000, scoped, tag = 'scratch operand']
  %s0 = inlined_call_operand.vmem [shape: bf16[2,32,8,8], index: 0, kind: input, shape index: {}]
  %s1 = inlined_call_operand.vmem [shape: bf16[2,32,8,8], index: 1, kind: input, shape index: {}]
  %s2 = inlined_call_operand.vmem [shape: bf16[2,32,8,8], index: 2, kind: output, shape index: {}]
  %s3 = sld [smem:[#allocation0]]
  $region49: #{triangle_multiplicative_forward.4} parent=0
    _
  %s5 = ssub.s32 1, %s3
  %s6 = scalar_select 0, %s5, %s3
  loop: start=0, step=1, limit=10
  $region2: #{triangle_multiplicative_forward.4} parent=0 // loop_pre_header
    _
  $region3: #{triangle_multiplicative_forward.4} parent=0 // loop_header
    %s8 = sphi 0, %s12
    %p9 = scmp.ge.s32.totalorder %s8, 10
    %s15 = sphi 0, %s48
    %s16 = sphi 0, %s44
    %s17 = sphi 0, %s40
    %s18 = sphi 0, %s36
    %s19 = sphi 0, %s32
    %s20 = sphi 0, %s15
    %s21 = sphi 0, %s16
    %s22 = sphi 0, %s17
    %s23 = sphi 0, %s18
    %s24 = sphi 0, %s19
    %s25 = sphi 0, %s20
    %s26 = sphi 0, %s21
    %s27 = sphi 0, %s22
    %s28 = sphi 0, %s23
    %s29 = sphi 0, %s24
    %s57 = sphi 0, %s59
    %s60 = sphi 0, %s57
    %s61 = sphi 0, %s60
    %s77 = sphi 0, %s61
    %s89 = sphi 0, %s91
    %s92 = sphi 0, %s89
    %s93 = sphi 0, %s92
    %s109 = sphi 0, %s93
    %s121 = sphi 0, %s123
    %s124 = sphi 0, %s121
    %s125 = sphi 0, %s124
    %s141 = sphi 0, %s125
  $region4: #{triangle_multiplicative_forward.4} parent=0 // loop_header_branch
    %11 = sbr.rel (%p9) target = $region8
  $region5: #{triangle_multiplicative_forward.4} parent=0 // loop_body
    %s13 = ssub.s32 %s8, 1
    %s14 = ssub.s32 %s8, 2
    %s30 = sadd.s32 1, %s19
    %p31 = scmp.ge.s32.totalorder %s30, 1
    %s32 = scalar_select %p31, 0, %s30
    %s33 = sadd.s32 1, %s18
    %s34 = scalar_select %p31, %s33, %s18
    %p35 = scmp.ge.s32.totalorder %s34, 1
    %s36 = scalar_select %p35, 0, %s34
    %s37 = sadd.s32 1, %s17
    %s38 = scalar_select %p35, %s37, %s17
    %p39 = scmp.ge.s32.totalorder %s38, 1
    %s40 = scalar_select %p39, 0, %s38
    %s41 = sadd.s32 1, %s16
    %s42 = scalar_select %p39, %s41, %s16
    %p43 = scmp.ge.s32.totalorder %s42, 4
    %s44 = scalar_select %p43, 0, %s42
    %s45 = sadd.s32 1, %s15
    %s46 = scalar_select %p43, %s45, %s15
    %p47 = scmp.ge.s32.totalorder %s46, 2
    %s48 = scalar_select %p47, 0, %s46
    %s49 = ssub.s32 %s15, %s48
    %s50 = ssub.s32 %s16, %s44
    %s51 = sor.u32 %s49, %s50
    %s52 = ssub.s32 %s17, %s40
    %s53 = sor.u32 %s51, %s52
    %s54 = ssub.s32 %s19, %s32
    %s55 = sor.u32 %s53, %s54
    %p56 = scmp.eq.s32.totalorder %s55, 0
    %s58 = sadd.s32 %s57, 1
    %s59 = scalar_select %p56, %s57, %s58
    %p62 = pneg %p56
    %p63 = scmp.eq.s32.totalorder %s8, 7
    %p64 = por %p62, %p63
    %p65 = scmp.ne.s32.totalorder %s57, %s60
    %p66 = scmp.eq.s32.totalorder %s8, 0
    %p67 = por %p65, %p66
    %p68 = scmp.ne.s32.totalorder %s57, %s60
    %p69 = scmp.eq.s32.totalorder %s13, 7
    %p70 = por %p68, %p69
    %p71 = scmp.ne.s32.totalorder %s60, %s61
    %p72 = scmp.eq.s32.totalorder %s13, 0
    %p73 = por %p71, %p72
    %p74 = scmp.ne.s32.totalorder %s60, %s61
    %p75 = scmp.eq.s32.totalorder %s14, 7
    %p76 = por %p74, %p75
    %p78 = scmp.ne.s32.totalorder %s61, %s77
    %p79 = scmp.eq.s32.totalorder %s14, 0
    %p80 = por %p78, %p79
    %s81 = ssub.s32 %s15, %s48
    %s82 = ssub.s32 %s16, %s44
    %s83 = sor.u32 %s81, %s82
    %s84 = ssub.s32 %s19, %s32
    %s85 = sor.u32 %s83, %s84
    %s86 = ssub.s32 %s18, %s36
    %s87 = sor.u32 %s85, %s86
    %p88 = scmp.eq.s32.totalorder %s87, 0
    %s90 = sadd.s32 %s89, 1
    %s91 = scalar_select %p88, %s89, %s90
    %p94 = pneg %p88
    %p95 = scmp.eq.s32.totalorder %s8, 7
    %p96 = por %p94, %p95
    %p97 = scmp.ne.s32.totalorder %s89, %s92
    %p98 = scmp.eq.s32.totalorder %s8, 0
    %p99 = por %p97, %p98
    %p100 = scmp.ne.s32.totalorder %s89, %s92
    %p101 = scmp.eq.s32.totalorder %s13, 7
    %p102 = por %p100, %p101
    %p103 = scmp.ne.s32.totalorder %s92, %s93
    %p104 = scmp.eq.s32.totalorder %s13, 0
    %p105 = por %p103, %p104
    %p106 = scmp.ne.s32.totalorder %s92, %s93
    %p107 = scmp.eq.s32.totalorder %s14, 7
    %p108 = por %p106, %p107
    %p110 = scmp.ne.s32.totalorder %s93, %s109
    %p111 = scmp.eq.s32.totalorder %s14, 0
    %p112 = por %p110, %p111
    %s113 = ssub.s32 %s15, %s48
    %s114 = ssub.s32 %s16, %s44
    %s115 = sor.u32 %s113, %s114
    %s116 = ssub.s32 %s17, %s40
    %s117 = sor.u32 %s115, %s116
    %s118 = ssub.s32 %s18, %s36
    %s119 = sor.u32 %s117, %s118
    %p120 = scmp.eq.s32.totalorder %s119, 0
    %s122 = sadd.s32 %s121, 1
    %s123 = scalar_select %p120, %s121, %s122
    %p126 = pneg %p120
    %p127 = scmp.eq.s32.totalorder %s8, 7
    %p128 = por %p126, %p127
    %p129 = scmp.ne.s32.totalorder %s121, %s124
    %p130 = scmp.eq.s32.totalorder %s8, 0
    %p131 = por %p129, %p130
    %p132 = scmp.ne.s32.totalorder %s121, %s124
    %p133 = scmp.eq.s32.totalorder %s13, 7
    %p134 = por %p132, %p133
    %p135 = scmp.ne.s32.totalorder %s124, %s125
    %p136 = scmp.eq.s32.totalorder %s13, 0
    %p137 = por %p135, %p136
    %p138 = scmp.ne.s32.totalorder %s124, %s125
    %p139 = scmp.eq.s32.totalorder %s14, 7
    %p140 = por %p138, %p139
    %p142 = scmp.ne.s32.totalorder %s125, %s141
    %p143 = scmp.eq.s32.totalorder %s14, 0
    %p144 = por %p142, %p143
    %p145 = scmp.le.s32.totalorder 1, %s8
    %p146 = scmp.lt.s32.totalorder %s8, 9
    %p147 = pnand %p145, %p146
    %p148 = pneg %p147
    // Predicated region
    $region9: #{triangle_multiplicative_forward.4} parent=5 // pred_check
      _
    $region10: #{triangle_multiplicative_forward.4} parent=5 // pred_check_branch
      %150 = sbr.rel (%p147) target = $region12
    $region11: #{triangle_multiplicative_forward.4} parent=5 // pred_region
      %s151 = ssub.s32 %s8, 1
    $region12: #{triangle_multiplicative_forward.4} parent=5 // pred_fallthru
      _
    %p152 = scmp.lt.s32.totalorder %s8, 8
    // Predicated region
    $region13: #{triangle_multiplicative_forward.4} parent=5 // pred_check
      %p153 = pneg %p152
    $region14: #{triangle_multiplicative_forward.4} parent=5 // pred_check_branch
      %155 = sbr.rel (%p153) target = $region16
    $region15: #{triangle_multiplicative_forward.4} parent=5 // pred_region
      // Predicated region
      $region17: #{triangle_multiplicative_forward.4} parent=15 // pred_check
        %p156 = pneg %p67
      $region18: #{triangle_multiplicative_forward.4} parent=15 // pred_check_branch
        %158 = sbr.rel (%p156) target = $region20
      $region19: #{triangle_multiplicative_forward.4} parent=15 // pred_region
        %s159 = smul.u32 8, %s16
        %p160 = scmp.lt.s32.totalorder %s15, 1
        %s161 = scalar_select %p160, %s15, 1
        %p162 = scmp.lt.s32.totalorder %s159, 31
        %s163 = scalar_select %p162, %s159, 31
        %p164 = scmp.lt.s32.totalorder %s17, 0
        %s165 = scalar_select %p164, %s17, 0
        %p166 = scmp.lt.s32.totalorder %s19, 0
        %s167 = scalar_select %p166, %s19, 0
        %s168 = sadd.s32 %s167, %s165
        %s169 = sadd.s32 %s168, %s163
        %s170 = smul.addr %s161, 32
        %s171 = sadd.s32 %s169, %s170
        %s172 = smul.addr %s171, 4
        %s173 = scalar_lea.vmem %s0, %s172
        %s174 = smul.u32 8, %s16
      $region20: #{triangle_multiplicative_forward.4} parent=15 // pred_fallthru
        _
      // Predicated region
      $region21: #{triangle_multiplicative_forward.4} parent=15 // pred_check
        %p175 = pneg %p99
      $region22: #{triangle_multiplicative_forward.4} parent=15 // pred_check_branch
        %177 = sbr.rel (%p175) target = $region24
      $region23: #{triangle_multiplicative_forward.4} parent=15 // pred_region
        %s178 = smul.u32 8, %s16
        %p179 = scmp.lt.s32.totalorder %s15, 1
        %s180 = scalar_select %p179, %s15, 1
        %p181 = scmp.lt.s32.totalorder %s178, 31
        %s182 = scalar_select %p181, %s178, 31
        %p183 = scmp.lt.s32.totalorder %s19, 0
        %s184 = scalar_select %p183, %s19, 0
        %p185 = scmp.lt.s32.totalorder %s18, 0
        %s186 = scalar_select %p185, %s18, 0
        %s187 = sadd.s32 %s186, %s184
        %s188 = sadd.s32 %s187, %s182
        %s189 = smul.addr %s180, 32
        %s190 = sadd.s32 %s188, %s189
        %s191 = smul.addr %s190, 4
        %s192 = scalar_lea.vmem %s1, %s191
        %s193 = smul.u32 8, %s16
      $region24: #{triangle_multiplicative_forward.4} parent=15 // pred_fallthru
        _
    $region16: #{triangle_multiplicative_forward.4} parent=5 // pred_fallthru
      _
    %p194 = scmp.le.s32.totalorder 1, %s8
    %p195 = scmp.lt.s32.totalorder %s8, 9
    %p196 = pnand %p194, %p195
    %p197 = pneg %p196
    // Predicated region
    $region25: #{triangle_multiplicative_forward.4} parent=5 // pred_check
      _
    $region26: #{triangle_multiplicative_forward.4} parent=5 // pred_check_branch
      %199 = sbr.rel (%p196) target = $region28
    $region27: #{triangle_multiplicative_forward.4} parent=5 // pred_region
      %s200 = ssub.s32 %s8, 1
      %s201 = smul.u32 8, %s21
      %p202 = scmp.lt.s32.totalorder %s20, 1
      %s203 = scalar_select %p202, %s20, 1
      %p204 = scmp.lt.s32.totalorder %s201, 31
      %s205 = scalar_select %p204, %s201, 31
      %p206 = scmp.lt.s32.totalorder %s22, 0
      %s207 = scalar_select %p206, %s22, 0
      %p208 = scmp.lt.s32.totalorder %s24, 0
      %s209 = scalar_select %p208, %s24, 0
      %s210 = sadd.s32 %s209, %s207
      %s211 = sadd.s32 %s210, %s205
      %s212 = smul.addr %s203, 32
      %s213 = sadd.s32 %s211, %s212
      %s214 = smul.addr %s213, 4
      %s215 = scalar_lea.vmem %s0, %s214
      %p216 = pneg %p73
      %p217 = pneg %p70
      %s218 = smul.u32 8, %s21
      %p219 = scmp.lt.s32.totalorder %s20, 1
      %s220 = scalar_select %p219, %s20, 1
      %p221 = scmp.lt.s32.totalorder %s218, 31
      %s222 = scalar_select %p221, %s218, 31
      %p223 = scmp.lt.s32.totalorder %s24, 0
      %s224 = scalar_select %p223, %s24, 0
      %p225 = scmp.lt.s32.totalorder %s23, 0
      %s226 = scalar_select %p225, %s23, 0
      %s227 = sadd.s32 %s226, %s224
      %s228 = sadd.s32 %s227, %s222
      %s229 = smul.addr %s220, 32
      %s230 = sadd.s32 %s228, %s229
      %s231 = smul.addr %s230, 4
      %s232 = scalar_lea.vmem %s1, %s231
      %p233 = pneg %p105
      %p234 = pneg %p102
      %p235 = pneg %p137
      %p236 = pneg %p134
      %s237 = smul.u32 8, %s21
      %p238 = scmp.lt.s32.totalorder %s20, 1
      %s239 = scalar_select %p238, %s20, 1
      %p240 = scmp.lt.s32.totalorder %s237, 31
      %s241 = scalar_select %p240, %s237, 31
      %p242 = scmp.lt.s32.totalorder %s22, 0
      %s243 = scalar_select %p242, %s22, 0
      %p244 = scmp.lt.s32.totalorder %s23, 0
      %s245 = scalar_select %p244, %s23, 0
      %s246 = sadd.s32 %s245, %s243
      %s247 = sadd.s32 %s246, %s241
      %s248 = smul.addr %s239, 32
      %s249 = sadd.s32 %s247, %s248
      %s250 = smul.addr %s249, 4
      %s251 = scalar_lea.vmem %s2, %s250
      %s252 = smul.u32 8, %s21
      %p253 = scmp.lt.s32.totalorder %s20, 1
      %s254 = scalar_select %p253, %s20, 1
      %p255 = scmp.lt.s32.totalorder %s252, 31
      %s256 = scalar_select %p255, %s252, 31
      %p257 = scmp.lt.s32.totalorder %s22, 0
      %s258 = scalar_select %p257, %s22, 0
      %p259 = scmp.lt.s32.totalorder %s24, 0
      %s260 = scalar_select %p259, %s24, 0
      %s261 = sadd.s32 %s260, %s258
      %s262 = sadd.s32 %s261, %s256
      %s263 = smul.addr %s254, 32
      %s264 = sadd.s32 %s262, %s263
      %s265 = smul.addr %s264, 4
      %s266 = scalar_lea.vmem %s0, %s265
      %s267 = smul.u32 8, %s21
      %s268 = smul.u32 8, %s21
      %p269 = scmp.lt.s32.totalorder %s20, 1
      %s270 = scalar_select %p269, %s20, 1
      %p271 = scmp.lt.s32.totalorder %s268, 31
      %s272 = scalar_select %p271, %s268, 31
      %p273 = scmp.lt.s32.totalorder %s24, 0
      %s274 = scalar_select %p273, %s24, 0
      %p275 = scmp.lt.s32.totalorder %s23, 0
      %s276 = scalar_select %p275, %s23, 0
      %s277 = sadd.s32 %s276, %s274
      %s278 = sadd.s32 %s277, %s272
      %s279 = smul.addr %s270, 32
      %s280 = sadd.s32 %s278, %s279
      %s281 = smul.addr %s280, 4
      %s282 = scalar_lea.vmem %s1, %s281
      %s283 = smul.u32 8, %s21
      %s284 = smul.u32 8, %s21
      %p285 = scmp.lt.s32.totalorder %s20, 1
      %s286 = scalar_select %p285, %s20, 1
      %p287 = scmp.lt.s32.totalorder %s284, 31
      %s288 = scalar_select %p287, %s284, 31
      %p289 = scmp.lt.s32.totalorder %s22, 0
      %s290 = scalar_select %p289, %s22, 0
      %p291 = scmp.lt.s32.totalorder %s23, 0
      %s292 = scalar_select %p291, %s23, 0
      %s293 = sadd.s32 %s292, %s290
      %s294 = sadd.s32 %s293, %s288
      %s295 = smul.addr %s286, 32
      %s296 = sadd.s32 %s294, %s295
      %s297 = smul.addr %s296, 4
      %s298 = scalar_lea.vmem %s2, %s297
      %s299 = smul.u32 8, %s21
      %p301 = scmp.eq.s32.totalorder %s24, 0
      // Predicated region
      $region29: #{triangle_multiplicative_forward.4} parent=27 // pred_check
        %p302 = pneg %p301
      $region30: #{triangle_multiplicative_forward.4} parent=27 // pred_check_branch
        %304 = sbr.rel (%p302) target = $region32
      $region31: #{triangle_multiplicative_forward.4} parent=27 // pred_region
        %vm305 = vcmask 64512
        %306 = vst.msk [vmem:[#allocation2] sm:$0xff] %vm305, 0.0
        %307 = vst.msk [vmem:[#allocation2 + $0x8] sm:$0xff] %vm305, 0.0
        %308 = vst.msk [vmem:[#allocation2 + $0x10] sm:$0xff] %vm305, 0.0
        %309 = vst.msk [vmem:[#allocation2 + $0x18] sm:$0xff] %vm305, 0.0
        %310 = vst.msk [vmem:[#allocation2 + $0x20] sm:$0xff] %vm305, 0.0
        %311 = vst.msk [vmem:[#allocation2 + $0x28] sm:$0xff] %vm305, 0.0
        %312 = vst.msk [vmem:[#allocation2 + $0x30] sm:$0xff] %vm305, 0.0
        %313 = vst.msk [vmem:[#allocation2 + $0x38] sm:$0xff] %vm305, 0.0
      $region32: #{triangle_multiplicative_forward.4} parent=27 // pred_fallthru
        _
      %v314 = vld [vmem:[#allocation2] sm:$0xff]
      %v315 = vld [vmem:[#allocation2 + $0x8] sm:$0xff]
      %v316 = vld [vmem:[#allocation2 + $0x10] sm:$0xff]
      %v317 = vld [vmem:[#allocation2 + $0x18] sm:$0xff]
      %v318 = vld [vmem:[#allocation2 + $0x20] sm:$0xff]
      %v319 = vld [vmem:[#allocation2 + $0x28] sm:$0xff]
      %v320 = vld [vmem:[#allocation2 + $0x30] sm:$0xff]
      %v321 = vld [vmem:[#allocation2 + $0x38] sm:$0xff]
      %v322 = vld [vmem:[%s266] sm:$0xf]
      %v323 = vld [vmem:[%s266 + $0x4] sm:$0xf]
      %v324 = vld [vmem:[%s266 + $0x8] sm:$0xf]
      %v325 = vld [vmem:[%s266 + $0xc] sm:$0xf]
      %v326 = vld [vmem:[%s266 + $0x10] sm:$0xf]
      %v327 = vld [vmem:[%s266 + $0x14] sm:$0xf]
      %v328 = vld [vmem:[%s266 + $0x18] sm:$0xf]
      %v329 = vld [vmem:[%s266 + $0x1c] sm:$0xf]
      %v330 = vld [vmem:[%s282] sm:$0xf]
      %v331 = vld [vmem:[%s282 + $0x4] sm:$0xf]
      %v332 = vld [vmem:[%s282 + $0x8] sm:$0xf]
      %v333 = vld [vmem:[%s282 + $0xc] sm:$0xf]
      %v334 = vld [vmem:[%s282 + $0x10] sm:$0xf]
      %v335 = vld [vmem:[%s282 + $0x14] sm:$0xf]
      %v336 = vld [vmem:[%s282 + $0x18] sm:$0xf]
      %v337 = vld [vmem:[%s282 + $0x1c] sm:$0xf]
      %vm338 = vcmask 64512
      %v340 = vsel %vm338, %v322, 0
      %vm342 = vcmask 1043456
      %v344 = vsel %vm342, %v330, 0
      %346 = vmatprep.subr.bf16.mxu0 0
      %347 = vmatpush1.bf16.msra.mxu0 %v344
      %348 = vmatprep.subr.bf16.mxu0 0
      %349 = vmatpush1.bf16.msra.mxu0 0
      %350 = vmatprep.subr.bf16.mxu0 0
      %351 = vmatpush1.bf16.msra.mxu0 0
      %352 = vmatprep.subr.bf16.mxu0 0
      %353 = vmatpush1.bf16.msra.mxu0 0
      %354 = vmatprep.subr.bf16.mxu0 0
      %355 = vmatpush1.bf16.msra.mxu0 0
      %356 = vmatprep.subr.bf16.mxu0 0
      %357 = vmatpush1.bf16.msra.mxu0 0
      %358 = vmatprep.subr.bf16.mxu0 0
      %359 = vmatpush1.bf16.msra.mxu0 0
      %360 = vmatprep.subr.bf16.mxu0 0
      %361 = vmatpush1.bf16.msra.mxu0 0
      %362 = vmatprep.subr.bf16.mxu0 0
      %363 = vmatpush1.bf16.msra.mxu0 0
      %364 = vmatprep.subr.bf16.mxu0 0
      %365 = vmatpush1.bf16.msra.mxu0 0
      %366 = vmatprep.subr.bf16.mxu0 0
      %367 = vmatpush1.bf16.msra.mxu0 0
      %368 = vmatprep.subr.bf16.mxu0 0
      %369 = vmatpush1.bf16.msra.mxu0 0
      %370 = vmatprep.subr.bf16.mxu0 0
      %371 = vmatpush1.bf16.msra.mxu0 0
      %372 = vmatprep.subr.bf16.mxu0 0
      %373 = vmatpush1.bf16.msra.mxu0 0
      %374 = vmatprep.subr.bf16.mxu0 0
      %375 = vmatpush1.bf16.msra.mxu0 0
      %376 = vmatprep.subr.bf16.mxu0 0
      %377 = vmatpush1.bf16.msra.mxu0 0
      %378 = vmatprep.mubr.bf16.mxu0 0
      %379 = vmatmul.mubr.bf16.gmra.mrb[0].mxu0 %v340
      %v380 = vpop.f32.mrb[0].mxu0
      %v381 = vadd.f32 0.0, %v380
      %v382 = vpop.f32.mrb[0].mxu0
      %v383 = vpop.f32.mrb[0].mxu0
      %v384 = vpop.f32.mrb[0].mxu0
      %385 = vdwg.mxu0
      %v387 = vsel %vm338, %v323, 0
      %v390 = vsel %vm342, %v331, 0
      %392 = vmatprep.subr.bf16.mxu0 0
      %393 = vmatpush1.bf16.msra.mxu0 %v390
      %394 = vmatprep.subr.bf16.mxu0 0
      %395 = vmatpush1.bf16.msra.mxu0 0
      %396 = vmatprep.subr.bf16.mxu0 0
      %397 = vmatpush1.bf16.msra.mxu0 0
      %398 = vmatprep.subr.bf16.mxu0 0
      %399 = vmatpush1.bf16.msra.mxu0 0
      %400 = vmatprep.subr.bf16.mxu0 0
      %401 = vmatpush1.bf16.msra.mxu0 0
      %402 = vmatprep.subr.bf16.mxu0 0
      %403 = vmatpush1.bf16.msra.mxu0 0
      %404 = vmatprep.subr.bf16.mxu0 0
      %405 = vmatpush1.bf16.msra.mxu0 0
      %406 = vmatprep.subr.bf16.mxu0 0
      %407 = vmatpush1.bf16.msra.mxu0 0
      %408 = vmatprep.subr.bf16.mxu0 0
      %409 = vmatpush1.bf16.msra.mxu0 0
      %410 = vmatprep.subr.bf16.mxu0 0
      %411 = vmatpush1.bf16.msra.mxu0 0
      %412 = vmatprep.subr.bf16.mxu0 0
      %413 = vmatpush1.bf16.msra.mxu0 0
      %414 = vmatprep.subr.bf16.mxu0 0
      %415 = vmatpush1.bf16.msra.mxu0 0
      %416 = vmatprep.subr.bf16.mxu0 0
      %417 = vmatpush1.bf16.msra.mxu0 0
      %418 = vmatprep.subr.bf16.mxu0 0
      %419 = vmatpush1.bf16.msra.mxu0 0
      %420 = vmatprep.subr.bf16.mxu0 0
      %421 = vmatpush1.bf16.msra.mxu0 0
      %422 = vmatprep.subr.bf16.mxu0 0
      %423 = vmatpush1.bf16.msra.mxu0 0
      %424 = vmatprep.mubr.bf16.mxu0 0
      %425 = vmatmul.mubr.bf16.gmra.mrb[0].mxu0 %v387
      %v426 = vpop.f32.mrb[0].mxu0
      %v427 = vadd.f32 0.0, %v426
      %v428 = vpop.f32.mrb[0].mxu0
      %v429 = vpop.f32.mrb[0].mxu0
      %v430 = vpop.f32.mrb[0].mxu0
      %431 = vdwg.mxu0
      %v433 = vsel %vm338, %v324, 0
      %v436 = vsel %vm342, %v332, 0
      %438 = vmatprep.subr.bf16.mxu0 0
      %439 = vmatpush1.bf16.msra.mxu0 %v436
      %440 = vmatprep.subr.bf16.mxu0 0
      %441 = vmatpush1.bf16.msra.mxu0 0
      %442 = vmatprep.subr.bf16.mxu0 0
      %443 = vmatpush1.bf16.msra.mxu0 0
      %444 = vmatprep.subr.bf16.mxu0 0
      %445 = vmatpush1.bf16.msra.mxu0 0
      %446 = vmatprep.subr.bf16.mxu0 0
      %447 = vmatpush1.bf16.msra.mxu0 0
      %448 = vmatprep.subr.bf16.mxu0 0
      %449 = vmatpush1.bf16.msra.mxu0 0
      %450 = vmatprep.subr.bf16.mxu0 0
      %451 = vmatpush1.bf16.msra.mxu0 0
      %452 = vmatprep.subr.bf16.mxu0 0
      %453 = vmatpush1.bf16.msra.mxu0 0
      %454 = vmatprep.subr.bf16.mxu0 0
      %455 = vmatpush1.bf16.msra.mxu0 0
      %456 = vmatprep.subr.bf16.mxu0 0
      %457 = vmatpush1.bf16.msra.mxu0 0
      %458 = vmatprep.subr.bf16.mxu0 0
      %459 = vmatpush1.bf16.msra.mxu0 0
      %460 = vmatprep.subr.bf16.mxu0 0
      %461 = vmatpush1.bf16.msra.mxu0 0
      %462 = vmatprep.subr.bf16.mxu0 0
      %463 = vmatpush1.bf16.msra.mxu0 0
      %464 = vmatprep.subr.bf16.mxu0 0
      %465 = vmatpush1.bf16.msra.mxu0 0
      %466 = vmatprep.subr.bf16.mxu0 0
      %467 = vmatpush1.bf16.msra.mxu0 0
      %468 = vmatprep.subr.bf16.mxu0 0
      %469 = vmatpush1.bf16.msra.mxu0 0
      %470 = vmatprep.mubr.bf16.mxu0 0
      %471 = vmatmul.mubr.bf16.gmra.mrb[0].mxu0 %v433
      %v472 = vpop.f32.mrb[0].mxu0
      %v473 = vadd.f32 0.0, %v472
      %v474 = vpop.f32.mrb[0].mxu0
      %v475 = vpop.f32.mrb[0].mxu0
      %v476 = vpop.f32.mrb[0].mxu0
      %477 = vdwg.mxu0
      %v479 = vsel %vm338, %v325, 0
      %v482 = vsel %vm342, %v333, 0
      %484 = vmatprep.subr.bf16.mxu0 0
      %485 = vmatpush1.bf16.msra.mxu0 %v482
      %486 = vmatprep.subr.bf16.mxu0 0
      %487 = vmatpush1.bf16.msra.mxu0 0
      %488 = vmatprep.subr.bf16.mxu0 0
      %489 = vmatpush1.bf16.msra.mxu0 0
      %490 = vmatprep.subr.bf16.mxu0 0
      %491 = vmatpush1.bf16.msra.mxu0 0
      %492 = vmatprep.subr.bf16.mxu0 0
      %493 = vmatpush1.bf16.msra.mxu0 0
      %494 = vmatprep.subr.bf16.mxu0 0
      %495 = vmatpush1.bf16.msra.mxu0 0
      %496 = vmatprep.subr.bf16.mxu0 0
      %497 = vmatpush1.bf16.msra.mxu0 0
      %498 = vmatprep.subr.bf16.mxu0 0
      %499 = vmatpush1.bf16.msra.mxu0 0
      %500 = vmatprep.subr.bf16.mxu0 0
      %501 = vmatpush1.bf16.msra.mxu0 0
      %502 = vmatprep.subr.bf16.mxu0 0
      %503 = vmatpush1.bf16.msra.mxu0 0
      %504 = vmatprep.subr.bf16.mxu0 0
      %505 = vmatpush1.bf16.msra.mxu0 0
      %506 = vmatprep.subr.bf16.mxu0 0
      %507 = vmatpush1.bf16.msra.mxu0 0
      %508 = vmatprep.subr.bf16.mxu0 0
      %509 = vmatpush1.bf16.msra.mxu0 0
      %510 = vmatprep.subr.bf16.mxu0 0
      %511 = vmatpush1.bf16.msra.mxu0 0
      %512 = vmatprep.subr.bf16.mxu0 0
      %513 = vmatpush1.bf16.msra.mxu0 0
      %514 = vmatprep.subr.bf16.mxu0 0
      %515 = vmatpush1.bf16.msra.mxu0 0
      %516 = vmatprep.mubr.bf16.mxu0 0
      %517 = vmatmul.mubr.bf16.gmra.mrb[0].mxu0 %v479
      %v518 = vpop.f32.mrb[0].mxu0
      %v519 = vadd.f32 0.0, %v518
      %v520 = vpop.f32.mrb[0].mxu0
      %v521 = vpop.f32.mrb[0].mxu0
      %v522 = vpop.f32.mrb[0].mxu0
      %523 = vdwg.mxu0
      %v525 = vsel %vm338, %v326, 0
      %v528 = vsel %vm342, %v334, 0
      %530 = vmatprep.subr.bf16.mxu0 0
      %531 = vmatpush1.bf16.msra.mxu0 %v528
      %532 = vmatprep.subr.bf16.mxu0 0
      %533 = vmatpush1.bf16.msra.mxu0 0
      %534 = vmatprep.subr.bf16.mxu0 0
      %535 = vmatpush1.bf16.msra.mxu0 0
      %536 = vmatprep.subr.bf16.mxu0 0
      %537 = vmatpush1.bf16.msra.mxu0 0
      %538 = vmatprep.subr.bf16.mxu0 0
      %539 = vmatpush1.bf16.msra.mxu0 0
      %540 = vmatprep.subr.bf16.mxu0 0
      %541 = vmatpush1.bf16.msra.mxu0 0
      %542 = vmatprep.subr.bf16.mxu0 0
      %543 = vmatpush1.bf16.msra.mxu0 0
      %544 = vmatprep.subr.bf16.mxu0 0
      %545 = vmatpush1.bf16.msra.mxu0 0
      %546 = vmatprep.subr.bf16.mxu0 0
      %547 = vmatpush1.bf16.msra.mxu0 0
      %548 = vmatprep.subr.bf16.mxu0 0
      %549 = vmatpush1.bf16.msra.mxu0 0
      %550 = vmatprep.subr.bf16.mxu0 0
      %551 = vmatpush1.bf16.msra.mxu0 0
      %552 = vmatprep.subr.bf16.mxu0 0
      %553 = vmatpush1.bf16.msra.mxu0 0
      %554 = vmatprep.subr.bf16.mxu0 0
      %555 = vmatpush1.bf16.msra.mxu0 0
      %556 = vmatprep.subr.bf16.mxu0 0
      %557 = vmatpush1.bf16.msra.mxu0 0
      %558 = vmatprep.subr.bf16.mxu0 0
      %559 = vmatpush1.bf16.msra.mxu0 0
      %560 = vmatprep.subr.bf16.mxu0 0
      %561 = vmatpush1.bf16.msra.mxu0 0
      %562 = vmatprep.mubr.bf16.mxu0 0
      %563 = vmatmul.mubr.bf16.gmra.mrb[0].mxu0 %v525
      %v564 = vpop.f32.mrb[0].mxu0
      %v565 = vadd.f32 0.0, %v564
      %v566 = vpop.f32.mrb[0].mxu0
      %v567 = vpop.f32.mrb[0].mxu0
      %v568 = vpop.f32.mrb[0].mxu0
      %569 = vdwg.mxu0
      %v571 = vsel %vm338, %v327, 0
      %v574 = vsel %vm342, %v335, 0
      %576 = vmatprep.subr.bf16.mxu0 0
      %577 = vmatpush1.bf16.msra.mxu0 %v574
      %578 = vmatprep.subr.bf16.mxu0 0
      %579 = vmatpush1.bf16.msra.mxu0 0
      %580 = vmatprep.subr.bf16.mxu0 0
      %581 = vmatpush1.bf16.msra.mxu0 0
      %582 = vmatprep.subr.bf16.mxu0 0
      %583 = vmatpush1.bf16.msra.mxu0 0
      %584 = vmatprep.subr.bf16.mxu0 0
      %585 = vmatpush1.bf16.msra.mxu0 0
      %586 = vmatprep.subr.bf16.mxu0 0
      %587 = vmatpush1.bf16.msra.mxu0 0
      %588 = vmatprep.subr.bf16.mxu0 0
      %589 = vmatpush1.bf16.msra.mxu0 0
      %590 = vmatprep.subr.bf16.mxu0 0
      %591 = vmatpush1.bf16.msra.mxu0 0
      %592 = vmatprep.subr.bf16.mxu0 0
      %593 = vmatpush1.bf16.msra.mxu0 0
      %594 = vmatprep.subr.bf16.mxu0 0
      %595 = vmatpush1.bf16.msra.mxu0 0
      %596 = vmatprep.subr.bf16.mxu0 0
      %597 = vmatpush1.bf16.msra.mxu0 0
      %598 = vmatprep.subr.bf16.mxu0 0
      %599 = vmatpush1.bf16.msra.mxu0 0
      %600 = vmatprep.subr.bf16.mxu0 0
      %601 = vmatpush1.bf16.msra.mxu0 0
      %602 = vmatprep.subr.bf16.mxu0 0
      %603 = vmatpush1.bf16.msra.mxu0 0
      %604 = vmatprep.subr.bf16.mxu0 0
      %605 = vmatpush1.bf16.msra.mxu0 0
      %606 = vmatprep.subr.bf16.mxu0 0
      %607 = vmatpush1.bf16.msra.mxu0 0
      %608 = vmatprep.mubr.bf16.mxu0 0
      %609 = vmatmul.mubr.bf16.gmra.mrb[0].mxu0 %v571
      %v610 = vpop.f32.mrb[0].mxu0
      %v611 = vadd.f32 0.0, %v610
      %v612 = vpop.f32.mrb[0].mxu0
      %v613 = vpop.f32.mrb[0].mxu0
      %v614 = vpop.f32.mrb[0].mxu0
      %615 = vdwg.mxu0
      %v617 = vsel %vm338, %v328, 0
      %v620 = vsel %vm342, %v336, 0
      %622 = vmatprep.subr.bf16.mxu0 0
      %623 = vmatpush1.bf16.msra.mxu0 %v620
      %624 = vmatprep.subr.bf16.mxu0 0
      %625 = vmatpush1.bf16.msra.mxu0 0
      %626 = vmatprep.subr.bf16.mxu0 0
      %627 = vmatpush1.bf16.msra.mxu0 0
      %628 = vmatprep.subr.bf16.mxu0 0
      %629 = vmatpush1.bf16.msra.mxu0 0
      %630 = vmatprep.subr.bf16.mxu0 0
      %631 = vmatpush1.bf16.msra.mxu0 0
      %632 = vmatprep.subr.bf16.mxu0 0
      %633 = vmatpush1.bf16.msra.mxu0 0
      %634 = vmatprep.subr.bf16.mxu0 0
      %635 = vmatpush1.bf16.msra.mxu0 0
      %636 = vmatprep.subr.bf16.mxu0 0
      %637 = vmatpush1.bf16.msra.mxu0 0
      %638 = vmatprep.subr.bf16.mxu0 0
      %639 = vmatpush1.bf16.msra.mxu0 0
      %640 = vmatprep.subr.bf16.mxu0 0
      %641 = vmatpush1.bf16.msra.mxu0 0
      %642 = vmatprep.subr.bf16.mxu0 0
      %643 = vmatpush1.bf16.msra.mxu0 0
      %644 = vmatprep.subr.bf16.mxu0 0
      %645 = vmatpush1.bf16.msra.mxu0 0
      %646 = vmatprep.subr.bf16.mxu0 0
      %647 = vmatpush1.bf16.msra.mxu0 0
      %648 = vmatprep.subr.bf16.mxu0 0
      %649 = vmatpush1.bf16.msra.mxu0 0
      %650 = vmatprep.subr.bf16.mxu0 0
      %651 = vmatpush1.bf16.msra.mxu0 0
      %652 = vmatprep.subr.bf16.mxu0 0
      %653 = vmatpush1.bf16.msra.mxu0 0
      %654 = vmatprep.mubr.bf16.mxu0 0
      %655 = vmatmul.mubr.bf16.gmra.mrb[0].mxu0 %v617
      %v656 = vpop.f32.mrb[0].mxu0
      %v657 = vadd.f32 0.0, %v656
      %v658 = vpop.f32.mrb[0].mxu0
      %v659 = vpop.f32.mrb[0].mxu0
      %v660 = vpop.f32.mrb[0].mxu0
      %661 = vdwg.mxu0
      %v663 = vsel %vm338, %v329, 0
      %v666 = vsel %vm342, %v337, 0
      %668 = vmatprep.subr.bf16.mxu0 0
      %669 = vmatpush1.bf16.msra.mxu0 %v666
      %670 = vmatprep.subr.bf16.mxu0 0
      %671 = vmatpush1.bf16.msra.mxu0 0
      %672 = vmatprep.subr.bf16.mxu0 0
      %673 = vmatpush1.bf16.msra.mxu0 0
      %674 = vmatprep.subr.bf16.mxu0 0
      %675 = vmatpush1.bf16.msra.mxu0 0
      %676 = vmatprep.subr.bf16.mxu0 0
      %677 = vmatpush1.bf16.msra.mxu0 0
      %678 = vmatprep.subr.bf16.mxu0 0
      %679 = vmatpush1.bf16.msra.mxu0 0
      %680 = vmatprep.subr.bf16.mxu0 0
      %681 = vmatpush1.bf16.msra.mxu0 0
      %682 = vmatprep.subr.bf16.mxu0 0
      %683 = vmatpush1.bf16.msra.mxu0 0
      %684 = vmatprep.subr.bf16.mxu0 0
      %685 = vmatpush1.bf16.msra.mxu0 0
      %686 = vmatprep.subr.bf16.mxu0 0
      %687 = vmatpush1.bf16.msra.mxu0 0
      %688 = vmatprep.subr.bf16.mxu0 0
      %689 = vmatpush1.bf16.msra.mxu0 0
      %690 = vmatprep.subr.bf16.mxu0 0
      %691 = vmatpush1.bf16.msra.mxu0 0
      %692 = vmatprep.subr.bf16.mxu0 0
      %693 = vmatpush1.bf16.msra.mxu0 0
      %694 = vmatprep.subr.bf16.mxu0 0
      %695 = vmatpush1.bf16.msra.mxu0 0
      %696 = vmatprep.subr.bf16.mxu0 0
      %697 = vmatpush1.bf16.msra.mxu0 0
      %698 = vmatprep.subr.bf16.mxu0 0
      %699 = vmatpush1.bf16.msra.mxu0 0
      %700 = vmatprep.mubr.bf16.mxu0 0
      %701 = vmatmul.mubr.bf16.gmra.mrb[0].mxu0 %v663
      %v702 = vpop.f32.mrb[0].mxu0
      %v703 = vadd.f32 0.0, %v702
      %v704 = vpop.f32.mrb[0].mxu0
      %v705 = vpop.f32.mrb[0].mxu0
      %v706 = vpop.f32.mrb[0].mxu0
      %707 = vdwg.mxu0
      %v708 = vadd.f32 %v314, %v381
      %v709 = vadd.f32 %v315, %v427
      %v710 = vadd.f32 %v316, %v473
      %v711 = vadd.f32 %v317, %v519
      %v712 = vadd.f32 %v318, %v565
      %v713 = vadd.f32 %v319, %v611
      %v714 = vadd.f32 %v320, %v657
      %v715 = vadd.f32 %v321, %v703
      %716 = vst.msk [vmem:[#allocation2] sm:$0xff] %vm338, %v708
      %717 = vst.msk [vmem:[#allocation2 + $0x8] sm:$0xff] %vm338, %v709
      %718 = vst.msk [vmem:[#allocation2 + $0x10] sm:$0xff] %vm338, %v710
      %719 = vst.msk [vmem:[#allocation2 + $0x18] sm:$0xff] %vm338, %v711
      %720 = vst.msk [vmem:[#allocation2 + $0x20] sm:$0xff] %vm338, %v712
      %721 = vst.msk [vmem:[#allocation2 + $0x28] sm:$0xff] %vm338, %v713
      %722 = vst.msk [vmem:[#allocation2 + $0x30] sm:$0xff] %vm338, %v714
      %723 = vst.msk [vmem:[#allocation2 + $0x38] sm:$0xff] %vm338, %v715
      // Predicated region
      $region33: #{triangle_multiplicative_forward.4} parent=27 // pred_check
        %p724 = pneg %p301
      $region34: #{triangle_multiplicative_forward.4} parent=27 // pred_check_branch
        %726 = sbr.rel (%p724) target = $region36
      $region35: #{triangle_multiplicative_forward.4} parent=27 // pred_region
        %v727 = vld [vmem:[#allocation2] sm:$0xff]
        %v728 = vld [vmem:[#allocation2 + $0x8] sm:$0xff]
        %v729 = vld [vmem:[#allocation2 + $0x10] sm:$0xff]
        %v730 = vld [vmem:[#allocation2 + $0x18] sm:$0xff]
        %v731 = vld [vmem:[#allocation2 + $0x20] sm:$0xff]
        %v732 = vld [vmem:[#allocation2 + $0x28] sm:$0xff]
        %v733 = vld [vmem:[#allocation2 + $0x30] sm:$0xff]
        %v734 = vld [vmem:[#allocation2 + $0x38] sm:$0xff]
        %v735 = vpack.c.bf16 %v727, %v727
        %v736 = vpack.c.bf16 %v728, %v728
        %v737 = vpack.c.bf16 %v729, %v729
        %v738 = vpack.c.bf16 %v730, %v730
        %v739 = vpack.c.bf16 %v731, %v731
        %v740 = vpack.c.bf16 %v732, %v732
        %v741 = vpack.c.bf16 %v733, %v733
        %v742 = vpack.c.bf16 %v734, %v734
        %vm743 = vcmask 60416
        %744 = vst.msk [vmem:[%s298] sm:$0xf] %vm743, %v735
        %745 = vst.msk [vmem:[%s298 + $0x4] sm:$0xf] %vm743, %v736
        %746 = vst.msk [vmem:[%s298 + $0x8] sm:$0xf] %vm743, %v737
        %747 = vst.msk [vmem:[%s298 + $0xc] sm:$0xf] %vm743, %v738
        %748 = vst.msk [vmem:[%s298 + $0x10] sm:$0xf] %vm743, %v739
        %749 = vst.msk [vmem:[%s298 + $0x14] sm:$0xf] %vm743, %v740
        %750 = vst.msk [vmem:[%s298 + $0x18] sm:$0xf] %vm743, %v741
        %751 = vst.msk [vmem:[%s298 + $0x1c] sm:$0xf] %vm743, %v742
      $region36: #{triangle_multiplicative_forward.4} parent=27 // pred_fallthru
        _
      %s752 = smul.u32 8, %s21
      %p753 = scmp.lt.s32.totalorder %s20, 1
      %s754 = scalar_select %p753, %s20, 1
      %p755 = scmp.lt.s32.totalorder %s752, 31
      %s756 = scalar_select %p755, %s752, 31
      %p757 = scmp.lt.s32.totalorder %s22, 0
      %s758 = scalar_select %p757, %s22, 0
      %p759 = scmp.lt.s32.totalorder %s23, 0
      %s760 = scalar_select %p759, %s23, 0
      %s761 = sadd.s32 %s760, %s758
      %s762 = sadd.s32 %s761, %s756
      %s763 = smul.addr %s754, 32
      %s764 = sadd.s32 %s762, %s763
      %s765 = smul.addr %s764, 4
      %s766 = scalar_lea.vmem %s2, %s765
      // Predicated region
      $region37: #{triangle_multiplicative_forward.4} parent=27 // pred_check
        %p767 = pneg %p134
      $region38: #{triangle_multiplicative_forward.4} parent=27 // pred_check_branch
        %769 = sbr.rel (%p767) target = $region40
      $region39: #{triangle_multiplicative_forward.4} parent=27 // pred_region
        %s770 = smul.u32 8, %s21
      $region40: #{triangle_multiplicative_forward.4} parent=27 // pred_fallthru
        _
    $region28: #{triangle_multiplicative_forward.4} parent=5 // pred_fallthru
      _
    %p771 = scmp.le.s32.totalorder 2, %s8
    // Predicated region
    $region41: #{triangle_multiplicative_forward.4} parent=5 // pred_check
      %p772 = pneg %p771
    $region42: #{triangle_multiplicative_forward.4} parent=5 // pred_check_branch
      %774 = sbr.rel (%p772) target = $region44
    $region43: #{triangle_multiplicative_forward.4} parent=5 // pred_region
      %s775 = ssub.s32 %s8, 2
      // Predicated region
      $region45: #{triangle_multiplicative_forward.4} parent=43 // pred_check
        %p776 = pneg %p140
      $region46: #{triangle_multiplicative_forward.4} parent=43 // pred_check_branch
        %778 = sbr.rel (%p776) target = $region48
      $region47: #{triangle_multiplicative_forward.4} parent=43 // pred_region
        %s779 = smul.u32 8, %s26
        %p780 = scmp.lt.s32.totalorder %s25, 1
        %s781 = scalar_select %p780, %s25, 1
        %p782 = scmp.lt.s32.totalorder %s779, 31
        %s783 = scalar_select %p782, %s779, 31
        %p784 = scmp.lt.s32.totalorder %s27, 0
        %s785 = scalar_select %p784, %s27, 0
        %p786 = scmp.lt.s32.totalorder %s28, 0
        %s787 = scalar_select %p786, %s28, 0
        %s788 = sadd.s32 %s787, %s785
        %s789 = sadd.s32 %s788, %s783
        %s790 = smul.addr %s781, 32
        %s791 = sadd.s32 %s789, %s790
        %s792 = smul.addr %s791, 4
        %s793 = scalar_lea.vmem %s2, %s792
      $region48: #{triangle_multiplicative_forward.4} parent=43 // pred_fallthru
        _
    $region44: #{triangle_multiplicative_forward.4} parent=5 // pred_fallthru
      _
  $region6: #{triangle_multiplicative_forward.4} parent=0 // loop_footer
    %s12 = sadd.s32 1, %s8
  $region7: #{triangle_multiplicative_forward.4} parent=0 // loop_footer_branch
    %7 = sbr.rel target = $region3
  $region8: #{triangle_multiplicative_forward.4} parent=0 // loop_exit
    _

// kernel: triangle_multiplicative_forward.3
$region0: #{triangle_multiplicative_forward.3}
  #allocation0 [shape = 'u32[]', space=smem, size = 0x4, offset = 0x4, fixed_abs, tag = 'smem constant byte address 0x4 - core index']
  #allocation1 [shape = 'u32[144,128]{1,0:T(1,128)}', space=vmem, size = 0x12000, scoped, tag = 'internal scratch']
  %s0 = inlined_call_operand.vmem [shape: f32[128,32], index: 0, kind: input, shape index: {}]
  %s1 = inlined_call_operand.vmem [shape: f32[128,1], index: 1, kind: input, shape index: {}]
  %s2 = inlined_call_operand.vmem [shape: f32[1,32], index: 2, kind: input, shape index: {}]
  %s3 = inlined_call_operand.vmem [shape: f32[1,32], index: 3, kind: input, shape index: {}]
  %s4 = inlined_call_operand.vmem [shape: bf16[32,160], index: 4, kind: input, shape index: {}]
  %s5 = inlined_call_operand.vmem [shape: f32[1,160], index: 5, kind: input, shape index: {}]
  %s6 = inlined_call_operand.vmem [shape: bf16[128,32], index: 6, kind: output, shape index: {0}]
  %s7 = inlined_call_operand.vmem [shape: bf16[128,32], index: 7, kind: output, shape index: {1}]
  %s8 = inlined_call_operand.vmem [shape: bf16[128,32], index: 8, kind: output, shape index: {2}]
  %9 = xla_tuple %s6, %s7, %s8
  %s10 = sld [smem:[#allocation0]]
  $region50: #{triangle_multiplicative_forward.3} parent=0
    _
  %s12 = ssub.s32 1, %s10
  %s13 = scalar_select 0, %s12, %s10
  // Predicated region
  $region2: #{triangle_multiplicative_forward.3} parent=0 // pred_check
    _
  $region3: #{triangle_multiplicative_forward.3} parent=0 // pred_check_branch
    %15 = sbr.rel (0) target = $region5
  $region4: #{triangle_multiplicative_forward.3} parent=0 // pred_region
    _
  $region5: #{triangle_multiplicative_forward.3} parent=0 // pred_fallthru
    _
  // Predicated region
  $region6: #{triangle_multiplicative_forward.3} parent=0 // pred_check
    _
  $region7: #{triangle_multiplicative_forward.3} parent=0 // pred_check_branch
    %17 = sbr.rel (0) target = $region9
  $region8: #{triangle_multiplicative_forward.3} parent=0 // pred_region
    _
  $region9: #{triangle_multiplicative_forward.3} parent=0 // pred_fallthru
    _
  // Predicated region
  $region10: #{triangle_multiplicative_forward.3} parent=0 // pred_check
    _
  $region11: #{triangle_multiplicative_forward.3} parent=0 // pred_check_branch
    %19 = sbr.rel (0) target = $region13
  $region12: #{triangle_multiplicative_forward.3} parent=0 // pred_region
    _
  $region13: #{triangle_multiplicative_forward.3} parent=0 // pred_fallthru
    _
  // Predicated region
  $region14: #{triangle_multiplicative_forward.3} parent=0 // pred_check
    _
  $region15: #{triangle_multiplicative_forward.3} parent=0 // pred_check_branch
    %21 = sbr.rel (0) target = $region17
  $region16: #{triangle_multiplicative_forward.3} parent=0 // pred_region
    _
  $region17: #{triangle_multiplicative_forward.3} parent=0 // pred_fallthru
    _
  // Predicated region
  $region18: #{triangle_multiplicative_forward.3} parent=0 // pred_check
    _
  $region19: #{triangle_multiplicative_forward.3} parent=0 // pred_check_branch
    %23 = sbr.rel (0) target = $region21
  $region20: #{triangle_multiplicative_forward.3} parent=0 // pred_region
    _
  $region21: #{triangle_multiplicative_forward.3} parent=0 // pred_fallthru
    _
  // Predicated region
  $region22: #{triangle_multiplicative_forward.3} parent=0 // pred_check
    _
  $region23: #{triangle_multiplicative_forward.3} parent=0 // pred_check_branch
    %25 = sbr.rel (0) target = $region25
  $region24: #{triangle_multiplicative_forward.3} parent=0 // pred_region
    _
  $region25: #{triangle_multiplicative_forward.3} parent=0 // pred_fallthru
    _
  %v27 = vld [vmem:[%s0] sm:$0xff]
  %v28 = vld [vmem:[%s0 + $0x8] sm:$0xff]
  %v29 = vld [vmem:[%s0 + $0x10] sm:$0xff]
  %v30 = vld [vmem:[%s0 + $0x18] sm:$0xff]
  %v31 = vld [vmem:[%s0 + $0x20] sm:$0xff]
  %v32 = vld [vmem:[%s0 + $0x28] sm:$0xff]
  %v33 = vld [vmem:[%s0 + $0x30] sm:$0xff]
  %v34 = vld [vmem:[%s0 + $0x38] sm:$0xff]
  %v35 = vld [vmem:[%s0 + $0x40] sm:$0xff]
  %v36 = vld [vmem:[%s0 + $0x48] sm:$0xff]
  %v37 = vld [vmem:[%s0 + $0x50] sm:$0xff]
  %v38 = vld [vmem:[%s0 + $0x58] sm:$0xff]
  %v39 = vld [vmem:[%s0 + $0x60] sm:$0xff]
  %v40 = vld [vmem:[%s0 + $0x68] sm:$0xff]
  %v41 = vld [vmem:[%s0 + $0x70] sm:$0xff]
  %v42 = vld [vmem:[%s0 + $0x78] sm:$0xff]
  %vm43 = vcmask 261120
  %v44 = vsel %vm43, %v27, 0.0
  %45 = vadd.xlane.f32.xlu0 %v44
  %v46 = vpop.xlane.xlu0 %45
  %v47 = vsel %vm43, %v28, 0.0
  %48 = vadd.xlane.f32.xlu0 %v47
  %v49 = vpop.xlane.xlu0 %48
  %v50 = vsel %vm43, %v29, 0.0
  %51 = vadd.xlane.f32.xlu0 %v50
  %v52 = vpop.xlane.xlu0 %51
  %v53 = vsel %vm43, %v30, 0.0
  %54 = vadd.xlane.f32.xlu0 %v53
  %v55 = vpop.xlane.xlu0 %54
  %v56 = vsel %vm43, %v31, 0.0
  %57 = vadd.xlane.f32.xlu0 %v56
  %v58 = vpop.xlane.xlu0 %57
  %v59 = vsel %vm43, %v32, 0.0
  %60 = vadd.xlane.f32.xlu0 %v59
  %v61 = vpop.xlane.xlu0 %60
  %v62 = vsel %vm43, %v33, 0.0
  %63 = vadd.xlane.f32.xlu0 %v62
  %v64 = vpop.xlane.xlu0 %63
  %v65 = vsel %vm43, %v34, 0.0
  %66 = vadd.xlane.f32.xlu0 %v65
  %v67 = vpop.xlane.xlu0 %66
  %v68 = vsel %vm43, %v35, 0.0
  %69 = vadd.xlane.f32.xlu0 %v68
  %v70 = vpop.xlane.xlu0 %69
  %v71 = vsel %vm43, %v36, 0.0
  %72 = vadd.xlane.f32.xlu0 %v71
  %v73 = vpop.xlane.xlu0 %72
  %v74 = vsel %vm43, %v37, 0.0
  %75 = vadd.xlane.f32.xlu0 %v74
  %v76 = vpop.xlane.xlu0 %75
  %v77 = vsel %vm43, %v38, 0.0
  %78 = vadd.xlane.f32.xlu0 %v77
  %v79 = vpop.xlane.xlu0 %78
  %v80 = vsel %vm43, %v39, 0.0
  %81 = vadd.xlane.f32.xlu0 %v80
  %v82 = vpop.xlane.xlu0 %81
  %v83 = vsel %vm43, %v40, 0.0
  %84 = vadd.xlane.f32.xlu0 %v83
  %v85 = vpop.xlane.xlu0 %84
  %v86 = vsel %vm43, %v41, 0.0
  %87 = vadd.xlane.f32.xlu0 %v86
  %v88 = vpop.xlane.xlu0 %87
  %v89 = vsel %vm43, %v42, 0.0
  %90 = vadd.xlane.f32.xlu0 %v89
  %v91 = vpop.xlane.xlu0 %90
  %v92 = vrcp.pop 32.0
  %v93 = vmul.f32 %v46, %v92
  %v94 = vmul.f32 %v49, %v92
  %v95 = vmul.f32 %v52, %v92
  %v96 = vmul.f32 %v55, %v92
  %v97 = vmul.f32 %v58, %v92
  %v98 = vmul.f32 %v61, %v92
  %v99 = vmul.f32 %v64, %v92
  %v100 = vmul.f32 %v67, %v92
  %v101 = vmul.f32 %v70, %v92
  %v102 = vmul.f32 %v73, %v92
  %v103 = vmul.f32 %v76, %v92
  %v104 = vmul.f32 %v79, %v92
  %v105 = vmul.f32 %v82, %v92
  %v106 = vmul.f32 %v85, %v92
  %v107 = vmul.f32 %v88, %v92
  %v108 = vmul.f32 %v91, %v92
  %v109 = vsub.f32 %v27, %v93
  %v110 = vsub.f32 %v28, %v94
  %v111 = vsub.f32 %v29, %v95
  %v112 = vsub.f32 %v30, %v96
  %v113 = vsub.f32 %v31, %v97
  %v114 = vsub.f32 %v32, %v98
  %v115 = vsub.f32 %v33, %v99
  %v116 = vsub.f32 %v34, %v100
  %v117 = vsub.f32 %v35, %v101
  %v118 = vsub.f32 %v36, %v102
  %v119 = vsub.f32 %v37, %v103
  %v120 = vsub.f32 %v38, %v104
  %v121 = vsub.f32 %v39, %v105
  %v122 = vsub.f32 %v40, %v106
  %v123 = vsub.f32 %v41, %v107
  %v124 = vsub.f32 %v42, %v108
  %v125 = vmul.f32 %v109, %v109
  %v126 = vmul.f32 %v110, %v110
  %v127 = vmul.f32 %v111, %v111
  %v128 = vmul.f32 %v112, %v112
  %v129 = vmul.f32 %v113, %v113
  %v130 = vmul.f32 %v114, %v114
  %v131 = vmul.f32 %v115, %v115
  %v132 = vmul.f32 %v116, %v116
  %v133 = vmul.f32 %v117, %v117
  %v134 = vmul.f32 %v118, %v118
  %v135 = vmul.f32 %v119, %v119
  %v136 = vmul.f32 %v120, %v120
  %v137 = vmul.f32 %v121, %v121
  %v138 = vmul.f32 %v122, %v122
  %v139 = vmul.f32 %v123, %v123
  %v140 = vmul.f32 %v124, %v124
  %v141 = vsel %vm43, %v125, 0.0
  %142 = vadd.xlane.f32.xlu0 %v141
  %v143 = vpop.xlane.xlu0 %142
  %v144 = vsel %vm43, %v126, 0.0
  %145 = vadd.xlane.f32.xlu0 %v144
  %v146 = vpop.xlane.xlu0 %145
  %v147 = vsel %vm43, %v127, 0.0
  %148 = vadd.xlane.f32.xlu0 %v147
  %v149 = vpop.xlane.xlu0 %148
  %v150 = vsel %vm43, %v128, 0.0
  %151 = vadd.xlane.f32.xlu0 %v150
  %v152 = vpop.xlane.xlu0 %151
  %v153 = vsel %vm43, %v129, 0.0
  %154 = vadd.xlane.f32.xlu0 %v153
  %v155 = vpop.xlane.xlu0 %154
  %v156 = vsel %vm43, %v130, 0.0
  %157 = vadd.xlane.f32.xlu0 %v156
  %v158 = vpop.xlane.xlu0 %157
  %v159 = vsel %vm43, %v131, 0.0
  %160 = vadd.xlane.f32.xlu0 %v159
  %v161 = vpop.xlane.xlu0 %160
  %v162 = vsel %vm43, %v132, 0.0
  %163 = vadd.xlane.f32.xlu0 %v162
  %v164 = vpop.xlane.xlu0 %163
  %v165 = vsel %vm43, %v133, 0.0
  %166 = vadd.xlane.f32.xlu0 %v165
  %v167 = vpop.xlane.xlu0 %166
  %v168 = vsel %vm43, %v134, 0.0
  %169 = vadd.xlane.f32.xlu0 %v168
  %v170 = vpop.xlane.xlu0 %169
  %v171 = vsel %vm43, %v135, 0.0
  %172 = vadd.xlane.f32.xlu0 %v171
  %v173 = vpop.xlane.xlu0 %172
  %v174 = vsel %vm43, %v136, 0.0
  %175 = vadd.xlane.f32.xlu0 %v174
  %v176 = vpop.xlane.xlu0 %175
  %v177 = vsel %vm43, %v137, 0.0
  %178 = vadd.xlane.f32.xlu0 %v177
  %v179 = vpop.xlane.xlu0 %178
  %v180 = vsel %vm43, %v138, 0.0
  %181 = vadd.xlane.f32.xlu0 %v180
  %v182 = vpop.xlane.xlu0 %181
  %v183 = vsel %vm43, %v139, 0.0
  %184 = vadd.xlane.f32.xlu0 %v183
  %v185 = vpop.xlane.xlu0 %184
  %v186 = vsel %vm43, %v140, 0.0
  %187 = vadd.xlane.f32.xlu0 %v186
  %v188 = vpop.xlane.xlu0 %187
  %v189 = vmul.f32 %v143, %v92
  %v190 = vmul.f32 %v146, %v92
  %v191 = vmul.f32 %v149, %v92
  %v192 = vmul.f32 %v152, %v92
  %v193 = vmul.f32 %v155, %v92
  %v194 = vmul.f32 %v158, %v92
  %v195 = vmul.f32 %v161, %v92
  %v196 = vmul.f32 %v164, %v92
  %v197 = vmul.f32 %v167, %v92
  %v198 = vmul.f32 %v170, %v92
  %v199 = vmul.f32 %v173, %v92
  %v200 = vmul.f32 %v176, %v92
  %v201 = vmul.f32 %v179, %v92
  %v202 = vmul.f32 %v182, %v92
  %v203 = vmul.f32 %v185, %v92
  %v204 = vmul.f32 %v188, %v92
  %v205 = vadd.f32 %v189, 1e-05
  %v206 = vadd.f32 %v190, 1e-05
  %v207 = vadd.f32 %v191, 1e-05
  %v208 = vadd.f32 %v192, 1e-05
  %v209 = vadd.f32 %v193, 1e-05
  %v210 = vadd.f32 %v194, 1e-05
  %v211 = vadd.f32 %v195, 1e-05
  %v212 = vadd.f32 %v196, 1e-05
  %v213 = vadd.f32 %v197, 1e-05
  %v214 = vadd.f32 %v198, 1e-05
  %v215 = vadd.f32 %v199, 1e-05
  %v216 = vadd.f32 %v200, 1e-05
  %v217 = vadd.f32 %v201, 1e-05
  %v218 = vadd.f32 %v202, 1e-05
  %v219 = vadd.f32 %v203, 1e-05
  %v220 = vadd.f32 %v204, 1e-05
  %v221 = vrsqrt.pop %v205
  %v222 = vrsqrt.pop %v206
  %v223 = vrsqrt.pop %v207
  %v224 = vrsqrt.pop %v208
  %v225 = vrsqrt.pop %v209
  %v226 = vrsqrt.pop %v210
  %v227 = vrsqrt.pop %v211
  %v228 = vrsqrt.pop %v212
  %v229 = vrsqrt.pop %v213
  %v230 = vrsqrt.pop %v214
  %v231 = vrsqrt.pop %v215
  %v232 = vrsqrt.pop %v216
  %v233 = vrsqrt.pop %v217
  %v234 = vrsqrt.pop %v218
  %v235 = vrsqrt.pop %v219
  %v236 = vrsqrt.pop %v220
  %v237 = vmul.f32 %v109, %v221
  %v238 = vmul.f32 %v110, %v222
  %v239 = vmul.f32 %v111, %v223
  %v240 = vmul.f32 %v112, %v224
  %v241 = vmul.f32 %v113, %v225
  %v242 = vmul.f32 %v114, %v226
  %v243 = vmul.f32 %v115, %v227
  %v244 = vmul.f32 %v116, %v228
  %v245 = vmul.f32 %v117, %v229
  %v246 = vmul.f32 %v118, %v230
  %v247 = vmul.f32 %v119, %v231
  %v248 = vmul.f32 %v120, %v232
  %v249 = vmul.f32 %v121, %v233
  %v250 = vmul.f32 %v122, %v234
  %v251 = vmul.f32 %v123, %v235
  %v252 = vmul.f32 %v124, %v236
  %v253 = vld [vmem:[%s2] sm:$0x1]
  %v255 = vlaneseq
  %v256 = vshrl.u32 %v255, 7
  %v257 = vsub.s32 0, %v256
  %v258 = vrot.slane %v253, %v257
  %v260 = vmul.f32 %v237, %v258
  %v261 = vmul.f32 %v238, %v258
  %v262 = vmul.f32 %v239, %v258
  %v263 = vmul.f32 %v240, %v258
  %v264 = vmul.f32 %v241, %v258
  %v265 = vmul.f32 %v242, %v258
  %v266 = vmul.f32 %v243, %v258
  %v267 = vmul.f32 %v244, %v258
  %v268 = vmul.f32 %v245, %v258
  %v269 = vmul.f32 %v246, %v258
  %v270 = vmul.f32 %v247, %v258
  %v271 = vmul.f32 %v248, %v258
  %v272 = vmul.f32 %v249, %v258
  %v273 = vmul.f32 %v250, %v258
  %v274 = vmul.f32 %v251, %v258
  %v275 = vmul.f32 %v252, %v258
  %v276 = vld [vmem:[%s3] sm:$0x1]
  %v278 = vlaneseq
  %v279 = vshrl.u32 %v278, 7
  %v280 = vsub.s32 0, %v279
  %v281 = vrot.slane %v276, %v280
  %v283 = vadd.f32 %v260, %v281
  %v284 = vadd.f32 %v261, %v281
  %v285 = vadd.f32 %v262, %v281
  %v286 = vadd.f32 %v263, %v281
  %v287 = vadd.f32 %v264, %v281
  %v288 = vadd.f32 %v265, %v281
  %v289 = vadd.f32 %v266, %v281
  %v290 = vadd.f32 %v267, %v281
  %v291 = vadd.f32 %v268, %v281
  %v292 = vadd.f32 %v269, %v281
  %v293 = vadd.f32 %v270, %v281
  %v294 = vadd.f32 %v271, %v281
  %v295 = vadd.f32 %v272, %v281
  %v296 = vadd.f32 %v273, %v281
  %v297 = vadd.f32 %v274, %v281
  %v298 = vadd.f32 %v275, %v281
  %v299 = vpack.c.bf16 %v284, %v283
  %v300 = vpack.c.bf16 %v286, %v285
  %v301 = vpack.c.bf16 %v288, %v287
  %v302 = vpack.c.bf16 %v290, %v289
  %v303 = vpack.c.bf16 %v292, %v291
  %v304 = vpack.c.bf16 %v294, %v293
  %v305 = vpack.c.bf16 %v296, %v295
  %v306 = vpack.c.bf16 %v298, %v297
  %v307 = vld [vmem:[%s4] sm:$0xff]
  %v308 = vld [vmem:[%s4 + $0x8] sm:$0xff]
  %v309 = vld [vmem:[%s4 + $0x10] sm:$0xff]
  %v310 = vld [vmem:[%s4 + $0x18] sm:$0xff]
  %v311 = vld [vmem:[%s5] sm:$0x3]
  %v313 = vlaneseq
  %v314 = vshrl.u32 %v313, 7
  %v315 = vsub.s32 0, %v314
  %v316 = vrot.slane %v311, %v315
  %v317 = vlaneseq
  %v318 = vshrl.u32 %v317, 7
  %v319 = vsub.s32 1, %v318
  %v320 = vrot.slane %v311, %v319
  %v327 = vunpack.c.l.b16 %v307
  %v328 = vunpack.c.h.b16 %v307
  %v329 = vunpack.c.l.b16 %v308
  %v330 = vunpack.c.h.b16 %v308
  %v331 = vunpack.c.l.b16 %v309
  %v332 = vunpack.c.h.b16 %v309
  %v333 = vunpack.c.l.b16 %v310
  %v334 = vunpack.c.h.b16 %v310
  %v335 = vpack.c.b16 %v329, %v327
  %v336 = vpack.c.b16 %v330, %v328
  %v337 = vpack.c.b16 %v333, %v331
  %v338 = vpack.c.b16 %v334, %v332
  %v344 = vsel %vm43, %v299, 0
  %v347 = vsel %vm43, %v300, 0
  %v350 = vsel %vm43, %v301, 0
  %v353 = vsel %vm43, %v302, 0
  %v356 = vsel %vm43, %v303, 0
  %v359 = vsel %vm43, %v304, 0
  %v362 = vsel %vm43, %v305, 0
  %v365 = vsel %vm43, %v306, 0
  %367 = vmatprep.subr.bf16.mxu0 %v336
  %368 = vmatpush1.bf16.msra.mxu0 %v335
  %369 = vmatprep.subr.bf16.mxu0 %v338
  %370 = vmatpush1.bf16.msra.mxu0 %v337
  %371 = vmatprep.subr.bf16.mxu0 0
  %372 = vmatpush1.bf16.msra.mxu0 0
  %373 = vmatprep.subr.bf16.mxu0 0
  %374 = vmatpush1.bf16.msra.mxu0 0
  %375 = vmatprep.subr.bf16.mxu0 0
  %376 = vmatpush1.bf16.msra.mxu0 0
  %377 = vmatprep.subr.bf16.mxu0 0
  %378 = vmatpush1.bf16.msra.mxu0 0
  %379 = vmatprep.subr.bf16.mxu0 0
  %380 = vmatpush1.bf16.msra.mxu0 0
  %381 = vmatprep.subr.bf16.mxu0 0
  %382 = vmatpush1.bf16.msra.mxu0 0
  %383 = vmatprep.subr.bf16.mxu0 0
  %384 = vmatpush1.bf16.msra.mxu0 0
  %385 = vmatprep.subr.bf16.mxu0 0
  %386 = vmatpush1.bf16.msra.mxu0 0
  %387 = vmatprep.subr.bf16.mxu0 0
  %388 = vmatpush1.bf16.msra.mxu0 0
  %389 = vmatprep.subr.bf16.mxu0 0
  %390 = vmatpush1.bf16.msra.mxu0 0
  %391 = vmatprep.subr.bf16.mxu0 0
  %392 = vmatpush1.bf16.msra.mxu0 0
  %393 = vmatprep.subr.bf16.mxu0 0
  %394 = vmatpush1.bf16.msra.mxu0 0
  %395 = vmatprep.subr.bf16.mxu0 0
  %396 = vmatpush1.bf16.msra.mxu0 0
  %397 = vmatprep.subr.bf16.mxu0 0
  %398 = vmatpush1.bf16.msra.mxu0 0
  %399 = vmatprep.mubr.bf16.mxu0 0
  %400 = vmatmul.mubr.bf16.gmra.mrb[0].mxu0 %v344
  %v401 = vpop.f32.mrb[0].mxu0
  %v402 = vadd.f32 %v316, %v401
  %v403 = vpop.f32.mrb[0].mxu0
  %v404 = vadd.f32 %v320, %v403
  %v405 = vpop.f32.mrb[0].mxu0
  %v406 = vadd.f32 %v316, %v405
  %v407 = vpop.f32.mrb[0].mxu0
  %v408 = vadd.f32 %v320, %v407
  %409 = vmatprep.mubr.bf16.mxu0 0
  %410 = vmatmul.mubr.bf16.gmra.mrb[0].mxu0 %v347
  %v411 = vpop.f32.mrb[0].mxu0
  %v412 = vadd.f32 %v316, %v411
  %v413 = vpop.f32.mrb[0].mxu0
  %v414 = vadd.f32 %v320, %v413
  %v415 = vpop.f32.mrb[0].mxu0
  %v416 = vadd.f32 %v316, %v415
  %v417 = vpop.f32.mrb[0].mxu0
  %v418 = vadd.f32 %v320, %v417
  %419 = vmatprep.mubr.bf16.mxu0 0
  %420 = vmatmul.mubr.bf16.gmra.mrb[0].mxu0 %v350
  %v421 = vpop.f32.mrb[0].mxu0
  %v422 = vadd.f32 %v316, %v421
  %v423 = vpop.f32.mrb[0].mxu0
  %v424 = vadd.f32 %v320, %v423
  %v425 = vpop.f32.mrb[0].mxu0
  %v426 = vadd.f32 %v316, %v425
  %v427 = vpop.f32.mrb[0].mxu0
  %v428 = vadd.f32 %v320, %v427
  %429 = vmatprep.mubr.bf16.mxu0 0
  %430 = vmatmul.mubr.bf16.gmra.mrb[0].mxu0 %v353
  %v431 = vpop.f32.mrb[0].mxu0
  %v432 = vadd.f32 %v316, %v431
  %v433 = vpop.f32.mrb[0].mxu0
  %v434 = vadd.f32 %v320, %v433
  %v435 = vpop.f32.mrb[0].mxu0
  %v436 = vadd.f32 %v316, %v435
  %v437 = vpop.f32.mrb[0].mxu0
  %v438 = vadd.f32 %v320, %v437
  %439 = vmatprep.mubr.bf16.mxu0 0
  %440 = vmatmul.mubr.bf16.gmra.mrb[0].mxu0 %v356
  %v441 = vpop.f32.mrb[0].mxu0
  %v442 = vadd.f32 %v316, %v441
  %v443 = vpop.f32.mrb[0].mxu0
  %v444 = vadd.f32 %v320, %v443
  %v445 = vpop.f32.mrb[0].mxu0
  %v446 = vadd.f32 %v316, %v445
  %v447 = vpop.f32.mrb[0].mxu0
  %v448 = vadd.f32 %v320, %v447
  %449 = vmatprep.mubr.bf16.mxu0 0
  %450 = vmatmul.mubr.bf16.gmra.mrb[0].mxu0 %v359
  %v451 = vpop.f32.mrb[0].mxu0
  %v452 = vadd.f32 %v316, %v451
  %v453 = vpop.f32.mrb[0].mxu0
  %v454 = vadd.f32 %v320, %v453
  %v455 = vpop.f32.mrb[0].mxu0
  %v456 = vadd.f32 %v316, %v455
  %v457 = vpop.f32.mrb[0].mxu0
  %v458 = vadd.f32 %v320, %v457
  %459 = vmatprep.mubr.bf16.mxu0 0
  %460 = vmatmul.mubr.bf16.gmra.mrb[0].mxu0 %v362
  %v461 = vpop.f32.mrb[0].mxu0
  %v462 = vadd.f32 %v316, %v461
  %v463 = vpop.f32.mrb[0].mxu0
  %v464 = vadd.f32 %v320, %v463
  %v465 = vpop.f32.mrb[0].mxu0
  %v466 = vadd.f32 %v316, %v465
  %v467 = vpop.f32.mrb[0].mxu0
  %v468 = vadd.f32 %v320, %v467
  %469 = vmatprep.mubr.bf16.mxu0 0
  %470 = vmatmul.mubr.bf16.gmra.mrb[0].mxu0 %v365
  %v471 = vpop.f32.mrb[0].mxu0
  %v472 = vadd.f32 %v316, %v471
  %v473 = vpop.f32.mrb[0].mxu0
  %v474 = vadd.f32 %v320, %v473
  %v475 = vpop.f32.mrb[0].mxu0
  %v476 = vadd.f32 %v316, %v475
  %v477 = vpop.f32.mrb[0].mxu0
  %v478 = vadd.f32 %v320, %v477
  %479 = vdwg.mxu0
  %v480 = vxor.u32 %v402, 2147483648
  %v481 = vxor.u32 %v406, 2147483648
  %v482 = vxor.u32 %v412, 2147483648
  %v483 = vxor.u32 %v416, 2147483648
  %v484 = vxor.u32 %v422, 2147483648
  %v485 = vxor.u32 %v426, 2147483648
  %v486 = vxor.u32 %v432, 2147483648
  %v487 = vxor.u32 %v436, 2147483648
  %v488 = vxor.u32 %v442, 2147483648
  %v489 = vxor.u32 %v446, 2147483648
  %v490 = vxor.u32 %v452, 2147483648
  %v491 = vxor.u32 %v456, 2147483648
  %v492 = vxor.u32 %v462, 2147483648
  %v493 = vxor.u32 %v466, 2147483648
  %v494 = vxor.u32 %v472, 2147483648
  %v495 = vxor.u32 %v476, 2147483648
  %v496 = vmul.f32 %v480, 1.442695
  %v497 = vpow.pop %v496
  %v498 = vmul.f32 %v481, 1.442695
  %v499 = vpow.pop %v498
  %v500 = vmul.f32 %v482, 1.442695
  %v501 = vpow.pop %v500
  %v502 = vmul.f32 %v483, 1.442695
  %v503 = vpow.pop %v502
  %v504 = vmul.f32 %v484, 1.442695
  %v505 = vpow.pop %v504
  %v506 = vmul.f32 %v485, 1.442695
  %v507 = vpow.pop %v506
  %v508 = vmul.f32 %v486, 1.442695
  %v509 = vpow.pop %v508
  %v510 = vmul.f32 %v487, 1.442695
  %v511 = vpow.pop %v510
  %v512 = vmul.f32 %v488, 1.442695
  %v513 = vpow.pop %v512
  %v514 = vmul.f32 %v489, 1.442695
  %v515 = vpow.pop %v514
  %v516 = vmul.f32 %v490, 1.442695
  %v517 = vpow.pop %v516
  %v518 = vmul.f32 %v491, 1.442695
  %v519 = vpow.pop %v518
  %v520 = vmul.f32 %v492, 1.442695
  %v521 = vpow.pop %v520
  %v522 = vmul.f32 %v493, 1.442695
  %v523 = vpow.pop %v522
  %v524 = vmul.f32 %v494, 1.442695
  %v525 = vpow.pop %v524
  %v526 = vmul.f32 %v495, 1.442695
  %v527 = vpow.pop %v526
  %v528 = vadd.f32 %v497, 1.0
  %v529 = vadd.f32 %v499, 1.0
  %v530 = vadd.f32 %v501, 1.0
  %v531 = vadd.f32 %v503, 1.0
  %v532 = vadd.f32 %v505, 1.0
  %v533 = vadd.f32 %v507, 1.0
  %v534 = vadd.f32 %v509, 1.0
  %v535 = vadd.f32 %v511, 1.0
  %v536 = vadd.f32 %v513, 1.0
  %v537 = vadd.f32 %v515, 1.0
  %v538 = vadd.f32 %v517, 1.0
  %v539 = vadd.f32 %v519, 1.0
  %v540 = vadd.f32 %v521, 1.0
  %v541 = vadd.f32 %v523, 1.0
  %v542 = vadd.f32 %v525, 1.0
  %v543 = vadd.f32 %v527, 1.0
  %v544 = vrcp.pop %v528
  %v545 = vmul.f32 1.0, %v544
  %v546 = vrcp.pop %v529
  %v547 = vmul.f32 1.0, %v546
  %v548 = vrcp.pop %v530
  %v549 = vmul.f32 1.0, %v548
  %v550 = vrcp.pop %v531
  %v551 = vmul.f32 1.0, %v550
  %v552 = vrcp.pop %v532
  %v553 = vmul.f32 1.0, %v552
  %v554 = vrcp.pop %v533
  %v555 = vmul.f32 1.0, %v554
  %v556 = vrcp.pop %v534
  %v557 = vmul.f32 1.0, %v556
  %v558 = vrcp.pop %v535
  %v559 = vmul.f32 1.0, %v558
  %v560 = vrcp.pop %v536
  %v561 = vmul.f32 1.0, %v560
  %v562 = vrcp.pop %v537
  %v563 = vmul.f32 1.0, %v562
  %v564 = vrcp.pop %v538
  %v565 = vmul.f32 1.0, %v564
  %v566 = vrcp.pop %v539
  %v567 = vmul.f32 1.0, %v566
  %v568 = vrcp.pop %v540
  %v569 = vmul.f32 1.0, %v568
  %v570 = vrcp.pop %v541
  %v571 = vmul.f32 1.0, %v570
  %v572 = vrcp.pop %v542
  %v573 = vmul.f32 1.0, %v572
  %v574 = vrcp.pop %v543
  %v575 = vmul.f32 1.0, %v574
  %v576 = vxor.u32 %v404, 2147483648
  %v577 = vxor.u32 %v408, 2147483648
  %v578 = vxor.u32 %v414, 2147483648
  %v579 = vxor.u32 %v418, 2147483648
  %v580 = vxor.u32 %v424, 2147483648
  %v581 = vxor.u32 %v428, 2147483648
  %v582 = vxor.u32 %v434, 2147483648
  %v583 = vxor.u32 %v438, 2147483648
  %v584 = vxor.u32 %v444, 2147483648
  %v585 = vxor.u32 %v448, 2147483648
  %v586 = vxor.u32 %v454, 2147483648
  %v587 = vxor.u32 %v458, 2147483648
  %v588 = vxor.u32 %v464, 2147483648
  %v589 = vxor.u32 %v468, 2147483648
  %v590 = vxor.u32 %v474, 2147483648
  %v591 = vxor.u32 %v478, 2147483648
  %v592 = vmul.f32 %v576, 1.442695
  %v593 = vpow.pop %v592
  %v594 = vmul.f32 %v577, 1.442695
  %v595 = vpow.pop %v594
  %v596 = vmul.f32 %v578, 1.442695
  %v597 = vpow.pop %v596
  %v598 = vmul.f32 %v579, 1.442695
  %v599 = vpow.pop %v598
  %v600 = vmul.f32 %v580, 1.442695
  %v601 = vpow.pop %v600
  %v602 = vmul.f32 %v581, 1.442695
  %v603 = vpow.pop %v602
  %v604 = vmul.f32 %v582, 1.442695
  %v605 = vpow.pop %v604
  %v606 = vmul.f32 %v583, 1.442695
  %v607 = vpow.pop %v606
  %v608 = vmul.f32 %v584, 1.442695
  %v609 = vpow.pop %v608
  %v610 = vmul.f32 %v585, 1.442695
  %v611 = vpow.pop %v610
  %v612 = vmul.f32 %v586, 1.442695
  %v613 = vpow.pop %v612
  %v614 = vmul.f32 %v587, 1.442695
  %v615 = vpow.pop %v614
  %v616 = vmul.f32 %v588, 1.442695
  %v617 = vpow.pop %v616
  %v618 = vmul.f32 %v589, 1.442695
  %v619 = vpow.pop %v618
  %v620 = vmul.f32 %v590, 1.442695
  %v621 = vpow.pop %v620
  %v622 = vmul.f32 %v591, 1.442695
  %v623 = vpow.pop %v622
  %v624 = vadd.f32 %v593, 1.0
  %v625 = vadd.f32 %v595, 1.0
  %v626 = vadd.f32 %v597, 1.0
  %v627 = vadd.f32 %v599, 1.0
  %v628 = vadd.f32 %v601, 1.0
  %v629 = vadd.f32 %v603, 1.0
  %v630 = vadd.f32 %v605, 1.0
  %v631 = vadd.f32 %v607, 1.0
  %v632 = vadd.f32 %v609, 1.0
  %v633 = vadd.f32 %v611, 1.0
  %v634 = vadd.f32 %v613, 1.0
  %v635 = vadd.f32 %v615, 1.0
  %v636 = vadd.f32 %v617, 1.0
  %v637 = vadd.f32 %v619, 1.0
  %v638 = vadd.f32 %v621, 1.0
  %v639 = vadd.f32 %v623, 1.0
  %v640 = vrcp.pop %v624
  %v641 = vmul.f32 1.0, %v640
  %v642 = vrcp.pop %v625
  %v643 = vmul.f32 1.0, %v642
  %v644 = vrcp.pop %v626
  %v645 = vmul.f32 1.0, %v644
  %v646 = vrcp.pop %v627
  %v647 = vmul.f32 1.0, %v646
  %v648 = vrcp.pop %v628
  %v649 = vmul.f32 1.0, %v648
  %v650 = vrcp.pop %v629
  %v651 = vmul.f32 1.0, %v650
  %v652 = vrcp.pop %v630
  %v653 = vmul.f32 1.0, %v652
  %v654 = vrcp.pop %v631
  %v655 = vmul.f32 1.0, %v654
  %v656 = vrcp.pop %v632
  %v657 = vmul.f32 1.0, %v656
  %v658 = vrcp.pop %v633
  %v659 = vmul.f32 1.0, %v658
  %v660 = vrcp.pop %v634
  %v661 = vmul.f32 1.0, %v660
  %v662 = vrcp.pop %v635
  %v663 = vmul.f32 1.0, %v662
  %v664 = vrcp.pop %v636
  %v665 = vmul.f32 1.0, %v664
  %v666 = vrcp.pop %v637
  %v667 = vmul.f32 1.0, %v666
  %v668 = vrcp.pop %v638
  %v669 = vmul.f32 1.0, %v668
  %v670 = vrcp.pop %v639
  %v671 = vmul.f32 1.0, %v670
  %v672 = vld [vmem:[%s1] sm:$0xff]
  %v673 = vld [vmem:[%s1 + $0x8] sm:$0xff]
  %v674 = vld [vmem:[%s1 + $0x10] sm:$0xff]
  %v675 = vld [vmem:[%s1 + $0x18] sm:$0xff]
  %v676 = vld [vmem:[%s1 + $0x20] sm:$0xff]
  %v677 = vld [vmem:[%s1 + $0x28] sm:$0xff]
  %v678 = vld [vmem:[%s1 + $0x30] sm:$0xff]
  %v679 = vld [vmem:[%s1 + $0x38] sm:$0xff]
  %v680 = vld [vmem:[%s1 + $0x40] sm:$0xff]
  %v681 = vld [vmem:[%s1 + $0x48] sm:$0xff]
  %v682 = vld [vmem:[%s1 + $0x50] sm:$0xff]
  %v683 = vld [vmem:[%s1 + $0x58] sm:$0xff]
  %v684 = vld [vmem:[%s1 + $0x60] sm:$0xff]
  %v685 = vld [vmem:[%s1 + $0x68] sm:$0xff]
  %v686 = vld [vmem:[%s1 + $0x70] sm:$0xff]
  %v687 = vld [vmem:[%s1 + $0x78] sm:$0xff]
  %689 = vset.pattern.permute.xlu0 0
  %690 = vperm.xlu0 %689, %v672
  %v691 = vpop.permute.xlu0 %690
  %694 = vset.pattern.permute.xlu0 0
  %695 = vperm.xlu0 %694, %v673
  %v696 = vpop.permute.xlu0 %695
  %699 = vset.pattern.permute.xlu0 0
  %700 = vperm.xlu0 %699, %v674
  %v701 = vpop.permute.xlu0 %700
  %704 = vset.pattern.permute.xlu0 0
  %705 = vperm.xlu0 %704, %v675
  %v706 = vpop.permute.xlu0 %705
  %709 = vset.pattern.permute.xlu0 0
  %710 = vperm.xlu0 %709, %v676
  %v711 = vpop.permute.xlu0 %710
  %714 = vset.pattern.permute.xlu0 0
  %715 = vperm.xlu0 %714, %v677
  %v716 = vpop.permute.xlu0 %715
  %719 = vset.pattern.permute.xlu0 0
  %720 = vperm.xlu0 %719, %v678
  %v721 = vpop.permute.xlu0 %720
  %724 = vset.pattern.permute.xlu0 0
  %725 = vperm.xlu0 %724, %v679
  %v726 = vpop.permute.xlu0 %725
  %729 = vset.pattern.permute.xlu0 0
  %730 = vperm.xlu0 %729, %v680
  %v731 = vpop.permute.xlu0 %730
  %734 = vset.pattern.permute.xlu0 0
  %735 = vperm.xlu0 %734, %v681
  %v736 = vpop.permute.xlu0 %735
  %739 = vset.pattern.permute.xlu0 0
  %740 = vperm.xlu0 %739, %v682
  %v741 = vpop.permute.xlu0 %740
  %744 = vset.pattern.permute.xlu0 0
  %745 = vperm.xlu0 %744, %v683
  %v746 = vpop.permute.xlu0 %745
  %749 = vset.pattern.permute.xlu0 0
  %750 = vperm.xlu0 %749, %v684
  %v751 = vpop.permute.xlu0 %750
  %754 = vset.pattern.permute.xlu0 0
  %755 = vperm.xlu0 %754, %v685
  %v756 = vpop.permute.xlu0 %755
  %759 = vset.pattern.permute.xlu0 0
  %760 = vperm.xlu0 %759, %v686
  %v761 = vpop.permute.xlu0 %760
  %764 = vset.pattern.permute.xlu0 0
  %765 = vperm.xlu0 %764, %v687
  %v766 = vpop.permute.xlu0 %765
  %v768 = vmul.f32 %v402, %v691
  %v769 = vmul.f32 %v406, %v696
  %v770 = vmul.f32 %v412, %v701
  %v771 = vmul.f32 %v416, %v706
  %v772 = vmul.f32 %v422, %v711
  %v773 = vmul.f32 %v426, %v716
  %v774 = vmul.f32 %v432, %v721
  %v775 = vmul.f32 %v436, %v726
  %v776 = vmul.f32 %v442, %v731
  %v777 = vmul.f32 %v446, %v736
  %v778 = vmul.f32 %v452, %v741
  %v779 = vmul.f32 %v456, %v746
  %v780 = vmul.f32 %v462, %v751
  %v781 = vmul.f32 %v466, %v756
  %v782 = vmul.f32 %v472, %v761
  %v783 = vmul.f32 %v476, %v766
  %800 = vrot.lane.b32.xlu0 %v545, 64
  %v801 = vpop.permute.xlu0 %800
  %802 = vrot.lane.b32.xlu0 %v547, 64
  %v803 = vpop.permute.xlu0 %802
  %804 = vrot.lane.b32.xlu0 %v549, 64
  %v805 = vpop.permute.xlu0 %804
  %806 = vrot.lane.b32.xlu0 %v551, 64
  %v807 = vpop.permute.xlu0 %806
  %808 = vrot.lane.b32.xlu0 %v553, 64
  %v809 = vpop.permute.xlu0 %808
  %810 = vrot.lane.b32.xlu0 %v555, 64
  %v811 = vpop.permute.xlu0 %810
  %812 = vrot.lane.b32.xlu0 %v557, 64
  %v813 = vpop.permute.xlu0 %812
  %814 = vrot.lane.b32.xlu0 %v559, 64
  %v815 = vpop.permute.xlu0 %814
  %816 = vrot.lane.b32.xlu0 %v561, 64
  %v817 = vpop.permute.xlu0 %816
  %818 = vrot.lane.b32.xlu0 %v563, 64
  %v819 = vpop.permute.xlu0 %818
  %820 = vrot.lane.b32.xlu0 %v565, 64
  %v821 = vpop.permute.xlu0 %820
  %822 = vrot.lane.b32.xlu0 %v567, 64
  %v823 = vpop.permute.xlu0 %822
  %824 = vrot.lane.b32.xlu0 %v569, 64
  %v825 = vpop.permute.xlu0 %824
  %826 = vrot.lane.b32.xlu0 %v571, 64
  %v827 = vpop.permute.xlu0 %826
  %828 = vrot.lane.b32.xlu0 %v573, 64
  %v829 = vpop.permute.xlu0 %828
  %830 = vrot.lane.b32.xlu0 %v575, 64
  %v831 = vpop.permute.xlu0 %830
  %v848 = vmul.f32 %v768, %v801
  %v849 = vmul.f32 %v769, %v803
  %v850 = vmul.f32 %v770, %v805
  %v851 = vmul.f32 %v771, %v807
  %v852 = vmul.f32 %v772, %v809
  %v853 = vmul.f32 %v773, %v811
  %v854 = vmul.f32 %v774, %v813
  %v855 = vmul.f32 %v775, %v815
  %v856 = vmul.f32 %v776, %v817
  %v857 = vmul.f32 %v777, %v819
  %v858 = vmul.f32 %v778, %v821
  %v859 = vmul.f32 %v779, %v823
  %v860 = vmul.f32 %v780, %v825
  %v861 = vmul.f32 %v781, %v827
  %v862 = vmul.f32 %v782, %v829
  %v863 = vmul.f32 %v783, %v831
  %v864 = vpack.c.bf16 %v849, %v848
  %v865 = vpack.c.bf16 %v851, %v850
  %v866 = vpack.c.bf16 %v853, %v852
  %v867 = vpack.c.bf16 %v855, %v854
  %v868 = vpack.c.bf16 %v857, %v856
  %v869 = vpack.c.bf16 %v859, %v858
  %v870 = vpack.c.bf16 %v861, %v860
  %v871 = vpack.c.bf16 %v863, %v862
  %v880 = vunpack.c.l.b16 %v864
  %v881 = vunpack.c.h.b16 %v864
  %v882 = vunpack.c.l.b16 %v865
  %v883 = vunpack.c.h.b16 %v865
  %v884 = vunpack.c.l.b16 %v866
  %v885 = vunpack.c.h.b16 %v866
  %v886 = vunpack.c.l.b16 %v867
  %v887 = vunpack.c.h.b16 %v867
  %v888 = vunpack.c.l.b16 %v868
  %v889 = vunpack.c.h.b16 %v868
  %v890 = vunpack.c.l.b16 %v869
  %v891 = vunpack.c.h.b16 %v869
  %v892 = vunpack.c.l.b16 %v870
  %v893 = vunpack.c.h.b16 %v870
  %v894 = vunpack.c.l.b16 %v871
  %v895 = vunpack.c.h.b16 %v871
  %v896 = vpack.c.b16 %v880, %v880
  %v897 = vpack.c.b16 %v881, %v881
  %v898 = vpack.c.b16 %v882, %v882
  %v899 = vpack.c.b16 %v883, %v883
  %v900 = vpack.c.b16 %v884, %v884
  %v901 = vpack.c.b16 %v885, %v885
  %v902 = vpack.c.b16 %v886, %v886
  %v903 = vpack.c.b16 %v887, %v887
  %v904 = vpack.c.b16 %v888, %v888
  %v905 = vpack.c.b16 %v889, %v889
  %v906 = vpack.c.b16 %v890, %v890
  %v907 = vpack.c.b16 %v891, %v891
  %v908 = vpack.c.b16 %v892, %v892
  %v909 = vpack.c.b16 %v893, %v893
  %v910 = vpack.c.b16 %v894, %v894
  %v911 = vpack.c.b16 %v895, %v895
  %vm928 = vcmask 257024
  %929 = vst.msk [vmem:[%s6] sm:$0xf] %vm928, %v896
  %930 = vst.msk [vmem:[%s6 + $0x4] sm:$0xf] %vm928, %v897
  %931 = vst.msk [vmem:[%s6 + $0x8] sm:$0xf] %vm928, %v898
  %932 = vst.msk [vmem:[%s6 + $0xc] sm:$0xf] %vm928, %v899
  %933 = vst.msk [vmem:[%s6 + $0x10] sm:$0xf] %vm928, %v900
  %934 = vst.msk [vmem:[%s6 + $0x14] sm:$0xf] %vm928, %v901
  %935 = vst.msk [vmem:[%s6 + $0x18] sm:$0xf] %vm928, %v902
  %936 = vst.msk [vmem:[%s6 + $0x1c] sm:$0xf] %vm928, %v903
  %937 = vst.msk [vmem:[%s6 + $0x20] sm:$0xf] %vm928, %v904
  %938 = vst.msk [vmem:[%s6 + $0x24] sm:$0xf] %vm928, %v905
  %939 = vst.msk [vmem:[%s6 + $0x28] sm:$0xf] %vm928, %v906
  %940 = vst.msk [vmem:[%s6 + $0x2c] sm:$0xf] %vm928, %v907
  %941 = vst.msk [vmem:[%s6 + $0x30] sm:$0xf] %vm928, %v908
  %942 = vst.msk [vmem:[%s6 + $0x34] sm:$0xf] %vm928, %v909
  %943 = vst.msk [vmem:[%s6 + $0x38] sm:$0xf] %vm928, %v910
  %944 = vst.msk [vmem:[%s6 + $0x3c] sm:$0xf] %vm928, %v911
  %945 = vrot.lane.b32.xlu0 %v896, 96
  %v946 = vpop.permute.xlu0 %945
  %947 = vrot.lane.b32.xlu0 %v897, 96
  %v948 = vpop.permute.xlu0 %947
  %949 = vrot.lane.b32.xlu0 %v898, 96
  %v950 = vpop.permute.xlu0 %949
  %951 = vrot.lane.b32.xlu0 %v899, 96
  %v952 = vpop.permute.xlu0 %951
  %953 = vrot.lane.b32.xlu0 %v900, 96
  %v954 = vpop.permute.xlu0 %953
  %955 = vrot.lane.b32.xlu0 %v901, 96
  %v956 = vpop.permute.xlu0 %955
  %957 = vrot.lane.b32.xlu0 %v902, 96
  %v958 = vpop.permute.xlu0 %957
  %959 = vrot.lane.b32.xlu0 %v903, 96
  %v960 = vpop.permute.xlu0 %959
  %961 = vrot.lane.b32.xlu0 %v904, 96
  %v962 = vpop.permute.xlu0 %961
  %963 = vrot.lane.b32.xlu0 %v905, 96
  %v964 = vpop.permute.xlu0 %963
  %965 = vrot.lane.b32.xlu0 %v906, 96
  %v966 = vpop.permute.xlu0 %965
  %967 = vrot.lane.b32.xlu0 %v907, 96
  %v968 = vpop.permute.xlu0 %967
  %969 = vrot.lane.b32.xlu0 %v908, 96
  %v970 = vpop.permute.xlu0 %969
  %971 = vrot.lane.b32.xlu0 %v909, 96
  %v972 = vpop.permute.xlu0 %971
  %973 = vrot.lane.b32.xlu0 %v910, 96
  %v974 = vpop.permute.xlu0 %973
  %975 = vrot.lane.b32.xlu0 %v911, 96
  %v976 = vpop.permute.xlu0 %975
  %993 = vst.msk [vmem:[%s7] sm:$0xf] %vm928, %v946
  %994 = vst.msk [vmem:[%s7 + $0x4] sm:$0xf] %vm928, %v948
  %995 = vst.msk [vmem:[%s7 + $0x8] sm:$0xf] %vm928, %v950
  %996 = vst.msk [vmem:[%s7 + $0xc] sm:$0xf] %vm928, %v952
  %997 = vst.msk [vmem:[%s7 + $0x10] sm:$0xf] %vm928, %v954
  %998 = vst.msk [vmem:[%s7 + $0x14] sm:$0xf] %vm928, %v956
  %999 = vst.msk [vmem:[%s7 + $0x18] sm:$0xf] %vm928, %v958
  %1000 = vst.msk [vmem:[%s7 + $0x1c] sm:$0xf] %vm928, %v960
  %1001 = vst.msk [vmem:[%s7 + $0x20] sm:$0xf] %vm928, %v962
  %1002 = vst.msk [vmem:[%s7 + $0x24] sm:$0xf] %vm928, %v964
  %1003 = vst.msk [vmem:[%s7 + $0x28] sm:$0xf] %vm928, %v966
  %1004 = vst.msk [vmem:[%s7 + $0x2c] sm:$0xf] %vm928, %v968
  %1005 = vst.msk [vmem:[%s7 + $0x30] sm:$0xf] %vm928, %v970
  %1006 = vst.msk [vmem:[%s7 + $0x34] sm:$0xf] %vm928, %v972
  %1007 = vst.msk [vmem:[%s7 + $0x38] sm:$0xf] %vm928, %v974
  %1008 = vst.msk [vmem:[%s7 + $0x3c] sm:$0xf] %vm928, %v976
  %v1009 = vpack.c.bf16 %v643, %v641
  %v1010 = vpack.c.bf16 %v647, %v645
  %v1011 = vpack.c.bf16 %v651, %v649
  %v1012 = vpack.c.bf16 %v655, %v653
  %v1013 = vpack.c.bf16 %v659, %v657
  %v1014 = vpack.c.bf16 %v663, %v661
  %v1015 = vpack.c.bf16 %v667, %v665
  %v1016 = vpack.c.bf16 %v671, %v669
  %v1025 = vunpack.c.l.b16 %v1009
  %v1026 = vunpack.c.h.b16 %v1009
  %v1027 = vunpack.c.l.b16 %v1010
  %v1028 = vunpack.c.h.b16 %v1010
  %v1029 = vunpack.c.l.b16 %v1011
  %v1030 = vunpack.c.h.b16 %v1011
  %v1031 = vunpack.c.l.b16 %v1012
  %v1032 = vunpack.c.h.b16 %v1012
  %v1033 = vunpack.c.l.b16 %v1013
  %v1034 = vunpack.c.h.b16 %v1013
  %v1035 = vunpack.c.l.b16 %v1014
  %v1036 = vunpack.c.h.b16 %v1014
  %v1037 = vunpack.c.l.b16 %v1015
  %v1038 = vunpack.c.h.b16 %v1015
  %v1039 = vunpack.c.l.b16 %v1016
  %v1040 = vunpack.c.h.b16 %v1016
  %v1041 = vpack.c.b16 %v1025, %v1025
  %v1042 = vpack.c.b16 %v1026, %v1026
  %v1043 = vpack.c.b16 %v1027, %v1027
  %v1044 = vpack.c.b16 %v1028, %v1028
  %v1045 = vpack.c.b16 %v1029, %v1029
  %v1046 = vpack.c.b16 %v1030, %v1030
  %v1047 = vpack.c.b16 %v1031, %v1031
  %v1048 = vpack.c.b16 %v1032, %v1032
  %v1049 = vpack.c.b16 %v1033, %v1033
  %v1050 = vpack.c.b16 %v1034, %v1034
  %v1051 = vpack.c.b16 %v1035, %v1035
  %v1052 = vpack.c.b16 %v1036, %v1036
  %v1053 = vpack.c.b16 %v1037, %v1037
  %v1054 = vpack.c.b16 %v1038, %v1038
  %v1055 = vpack.c.b16 %v1039, %v1039
  %v1056 = vpack.c.b16 %v1040, %v1040
  %1073 = vst.msk [vmem:[%s8] sm:$0xf] %vm928, %v1041
  %1074 = vst.msk [vmem:[%s8 + $0x4] sm:$0xf] %vm928, %v1042
  %1075 = vst.msk [vmem:[%s8 + $0x8] sm:$0xf] %vm928, %v1043
  %1076 = vst.msk [vmem:[%s8 + $0xc] sm:$0xf] %vm928, %v1044
  %1077 = vst.msk [vmem:[%s8 + $0x10] sm:$0xf] %vm928, %v1045
  %1078 = vst.msk [vmem:[%s8 + $0x14] sm:$0xf] %vm928, %v1046
  %1079 = vst.msk [vmem:[%s8 + $0x18] sm:$0xf] %vm928, %v1047
  %1080 = vst.msk [vmem:[%s8 + $0x1c] sm:$0xf] %vm928, %v1048
  %1081 = vst.msk [vmem:[%s8 + $0x20] sm:$0xf] %vm928, %v1049
  %1082 = vst.msk [vmem:[%s8 + $0x24] sm:$0xf] %vm928, %v1050
  %1083 = vst.msk [vmem:[%s8 + $0x28] sm:$0xf] %vm928, %v1051
  %1084 = vst.msk [vmem:[%s8 + $0x2c] sm:$0xf] %vm928, %v1052
  %1085 = vst.msk [vmem:[%s8 + $0x30] sm:$0xf] %vm928, %v1053
  %1086 = vst.msk [vmem:[%s8 + $0x34] sm:$0xf] %vm928, %v1054
  %1087 = vst.msk [vmem:[%s8 + $0x38] sm:$0xf] %vm928, %v1055
  %1088 = vst.msk [vmem:[%s8 + $0x3c] sm:$0xf] %vm928, %v1056
  // Predicated region
  $region26: #{triangle_multiplicative_forward.3} parent=0 // pred_check
    _
  $region27: #{triangle_multiplicative_forward.3} parent=0 // pred_check_branch
    %1090 = sbr.rel (0) target = $region29
  $region28: #{triangle_multiplicative_forward.3} parent=0 // pred_region
    _
  $region29: #{triangle_multiplicative_forward.3} parent=0 // pred_fallthru
    _
  // Predicated region
  $region30: #{triangle_multiplicative_forward.3} parent=0 // pred_check
    _
  $region31: #{triangle_multiplicative_forward.3} parent=0 // pred_check_branch
    %1092 = sbr.rel (0) target = $region33
  $region32: #{triangle_multiplicative_forward.3} parent=0 // pred_region
    _
  $region33: #{triangle_multiplicative_forward.3} parent=0 // pred_fallthru
    _
  // Predicated region
  $region34: #{triangle_multiplicative_forward.3} parent=0 // pred_check
    _
  $region35: #{triangle_multiplicative_forward.3} parent=0 // pred_check_branch
    %1094 = sbr.rel (0) target = $region37
  $region36: #{triangle_multiplicative_forward.3} parent=0 // pred_region
    _
  $region37: #{triangle_multiplicative_forward.3} parent=0 // pred_fallthru
    _
  // Predicated region
  $region38: #{triangle_multiplicative_forward.3} parent=0 // pred_check
    _
  $region39: #{triangle_multiplicative_forward.3} parent=0 // pred_check_branch
    %1096 = sbr.rel (0) target = $region41
  $region40: #{triangle_multiplicative_forward.3} parent=0 // pred_region
    _
  $region41: #{triangle_multiplicative_forward.3} parent=0 // pred_fallthru
    _
  // Predicated region
  $region42: #{triangle_multiplicative_forward.3} parent=0 // pred_check
    _
  $region43: #{triangle_multiplicative_forward.3} parent=0 // pred_check_branch
    %1098 = sbr.rel (0) target = $region45
  $region44: #{triangle_multiplicative_forward.3} parent=0 // pred_region
    _
  $region45: #{triangle_multiplicative_forward.3} parent=0 // pred_fallthru
    _
  // Predicated region
  $region46: #{triangle_multiplicative_forward.3} parent=0 // pred_check
    _
  $region47: #{triangle_multiplicative_forward.3} parent=0 // pred_check_branch
    %1100 = sbr.rel (0) target = $region49
  $region48: #{triangle_multiplicative_forward.3} parent=0 // pred_region
    _
  $region49: #{triangle_multiplicative_forward.3} parent=0 // pred_fallthru
    _

// kernel: triangle_multiplicative_forward.5
$region0: #{triangle_multiplicative_forward.5}
  #allocation0 [shape = 'u32[]', space=smem, size = 0x4, offset = 0x4, fixed_abs, tag = 'smem constant byte address 0x4 - core index']
  #allocation1 [shape = 'u32[144,128]{1,0:T(1,128)}', space=vmem, size = 0x12000, scoped, tag = 'internal scratch']
  %s0 = inlined_call_operand.vmem [shape: bf16[128,32], index: 0, kind: input, shape index: {}]
  %s1 = inlined_call_operand.vmem [shape: bf16[128,32], index: 1, kind: input, shape index: {}]
  %s2 = inlined_call_operand.vmem [shape: f32[1,32], index: 2, kind: input, shape index: {}]
  %s3 = inlined_call_operand.vmem [shape: f32[1,32], index: 3, kind: input, shape index: {}]
  %s4 = inlined_call_operand.vmem [shape: bf16[32,32], index: 4, kind: input, shape index: {}]
  %s5 = inlined_call_operand.vmem [shape: f32[1,32], index: 5, kind: input, shape index: {}]
  %s6 = inlined_call_operand.hbm [shape: f32[128,32], index: 6, kind: output, shape index: {}]
  %s7 = sld [smem:[#allocation0]]
  $region34: #{triangle_multiplicative_forward.5} parent=0
    _
  %s9 = ssub.s32 1, %s7
  %s10 = scalar_select 0, %s9, %s7
  $region1: #{triangle_multiplicative_forward.5} parent=0
    #allocation2 [shape = 'u8[65536]{0}', space=vmem, size = 0x10000, scoped, tag = 'output window, operand 0, single buffered']
    #allocation3 [shape = 's32[1]{0}', space=sflag, size = 0x4, scoped, tag = 'scoped memory for triangle_multiplicative_forward.5']
    %11 = vsyncpa [#allocation3], 0
    // Predicated region
    $region2: #{triangle_multiplicative_forward.5} parent=1 // pred_check
      _
    $region3: #{triangle_multiplicative_forward.5} parent=1 // pred_check_branch
      %13 = sbr.rel (0) target = $region5
    $region4: #{triangle_multiplicative_forward.5} parent=1 // pred_region
      _
    $region5: #{triangle_multiplicative_forward.5} parent=1 // pred_fallthru
      _
    // Predicated region
    $region6: #{triangle_multiplicative_forward.5} parent=1 // pred_check
      _
    $region7: #{triangle_multiplicative_forward.5} parent=1 // pred_check_branch
      %15 = sbr.rel (0) target = $region9
    $region8: #{triangle_multiplicative_forward.5} parent=1 // pred_region
      _
    $region9: #{triangle_multiplicative_forward.5} parent=1 // pred_fallthru
      _
    // Predicated region
    $region10: #{triangle_multiplicative_forward.5} parent=1 // pred_check
      _
    $region11: #{triangle_multiplicative_forward.5} parent=1 // pred_check_branch
      %17 = sbr.rel (0) target = $region13
    $region12: #{triangle_multiplicative_forward.5} parent=1 // pred_region
      _
    $region13: #{triangle_multiplicative_forward.5} parent=1 // pred_fallthru
      _
    // Predicated region
    $region14: #{triangle_multiplicative_forward.5} parent=1 // pred_check
      _
    $region15: #{triangle_multiplicative_forward.5} parent=1 // pred_check_branch
      %19 = sbr.rel (0) target = $region17
    $region16: #{triangle_multiplicative_forward.5} parent=1 // pred_region
      _
    $region17: #{triangle_multiplicative_forward.5} parent=1 // pred_fallthru
      _
    // Predicated region
    $region18: #{triangle_multiplicative_forward.5} parent=1 // pred_check
      _
    $region19: #{triangle_multiplicative_forward.5} parent=1 // pred_check_branch
      %21 = sbr.rel (0) target = $region21
    $region20: #{triangle_multiplicative_forward.5} parent=1 // pred_region
      _
    $region21: #{triangle_multiplicative_forward.5} parent=1 // pred_fallthru
      _
    // Predicated region
    $region22: #{triangle_multiplicative_forward.5} parent=1 // pred_check
      _
    $region23: #{triangle_multiplicative_forward.5} parent=1 // pred_check_branch
      %23 = sbr.rel (0) target = $region25
    $region24: #{triangle_multiplicative_forward.5} parent=1 // pred_region
      _
    $region25: #{triangle_multiplicative_forward.5} parent=1 // pred_fallthru
      _
    %v25 = vld [vmem:[%s0] sm:$0xf]
    %v26 = vld [vmem:[%s0 + $0x4] sm:$0xf]
    %v27 = vld [vmem:[%s0 + $0x8] sm:$0xf]
    %v28 = vld [vmem:[%s0 + $0xc] sm:$0xf]
    %v29 = vld [vmem:[%s0 + $0x10] sm:$0xf]
    %v30 = vld [vmem:[%s0 + $0x14] sm:$0xf]
    %v31 = vld [vmem:[%s0 + $0x18] sm:$0xf]
    %v32 = vld [vmem:[%s0 + $0x1c] sm:$0xf]
    %v33 = vld [vmem:[%s0 + $0x20] sm:$0xf]
    %v34 = vld [vmem:[%s0 + $0x24] sm:$0xf]
    %v35 = vld [vmem:[%s0 + $0x28] sm:$0xf]
    %v36 = vld [vmem:[%s0 + $0x2c] sm:$0xf]
    %v37 = vld [vmem:[%s0 + $0x30] sm:$0xf]
    %v38 = vld [vmem:[%s0 + $0x34] sm:$0xf]
    %v39 = vld [vmem:[%s0 + $0x38] sm:$0xf]
    %v40 = vld [vmem:[%s0 + $0x3c] sm:$0xf]
    %v41 = vunpack.c.l.bf16 %v25
    %v42 = vunpack.c.l.bf16 %v26
    %v43 = vunpack.c.l.bf16 %v27
    %v44 = vunpack.c.l.bf16 %v28
    %v45 = vunpack.c.l.bf16 %v29
    %v46 = vunpack.c.l.bf16 %v30
    %v47 = vunpack.c.l.bf16 %v31
    %v48 = vunpack.c.l.bf16 %v32
    %v49 = vunpack.c.l.bf16 %v33
    %v50 = vunpack.c.l.bf16 %v34
    %v51 = vunpack.c.l.bf16 %v35
    %v52 = vunpack.c.l.bf16 %v36
    %v53 = vunpack.c.l.bf16 %v37
    %v54 = vunpack.c.l.bf16 %v38
    %v55 = vunpack.c.l.bf16 %v39
    %v56 = vunpack.c.l.bf16 %v40
    %vm57 = vcmask 261120
    %v58 = vsel %vm57, %v41, 0.0
    %59 = vadd.xlane.f32.xlu0 %v58
    %v60 = vpop.xlane.xlu0 %59
    %v61 = vsel %vm57, %v42, 0.0
    %62 = vadd.xlane.f32.xlu0 %v61
    %v63 = vpop.xlane.xlu0 %62
    %v64 = vsel %vm57, %v43, 0.0
    %65 = vadd.xlane.f32.xlu0 %v64
    %v66 = vpop.xlane.xlu0 %65
    %v67 = vsel %vm57, %v44, 0.0
    %68 = vadd.xlane.f32.xlu0 %v67
    %v69 = vpop.xlane.xlu0 %68
    %v70 = vsel %vm57, %v45, 0.0
    %71 = vadd.xlane.f32.xlu0 %v70
    %v72 = vpop.xlane.xlu0 %71
    %v73 = vsel %vm57, %v46, 0.0
    %74 = vadd.xlane.f32.xlu0 %v73
    %v75 = vpop.xlane.xlu0 %74
    %v76 = vsel %vm57, %v47, 0.0
    %77 = vadd.xlane.f32.xlu0 %v76
    %v78 = vpop.xlane.xlu0 %77
    %v79 = vsel %vm57, %v48, 0.0
    %80 = vadd.xlane.f32.xlu0 %v79
    %v81 = vpop.xlane.xlu0 %80
    %v82 = vsel %vm57, %v49, 0.0
    %83 = vadd.xlane.f32.xlu0 %v82
    %v84 = vpop.xlane.xlu0 %83
    %v85 = vsel %vm57, %v50, 0.0
    %86 = vadd.xlane.f32.xlu0 %v85
    %v87 = vpop.xlane.xlu0 %86
    %v88 = vsel %vm57, %v51, 0.0
    %89 = vadd.xlane.f32.xlu0 %v88
    %v90 = vpop.xlane.xlu0 %89
    %v91 = vsel %vm57, %v52, 0.0
    %92 = vadd.xlane.f32.xlu0 %v91
    %v93 = vpop.xlane.xlu0 %92
    %v94 = vsel %vm57, %v53, 0.0
    %95 = vadd.xlane.f32.xlu0 %v94
    %v96 = vpop.xlane.xlu0 %95
    %v97 = vsel %vm57, %v54, 0.0
    %98 = vadd.xlane.f32.xlu0 %v97
    %v99 = vpop.xlane.xlu0 %98
    %v100 = vsel %vm57, %v55, 0.0
    %101 = vadd.xlane.f32.xlu0 %v100
    %v102 = vpop.xlane.xlu0 %101
    %v103 = vsel %vm57, %v56, 0.0
    %104 = vadd.xlane.f32.xlu0 %v103
    %v105 = vpop.xlane.xlu0 %104
    %v106 = vrcp.pop 32.0
    %v107 = vmul.f32 %v60, %v106
    %v108 = vmul.f32 %v63, %v106
    %v109 = vmul.f32 %v66, %v106
    %v110 = vmul.f32 %v69, %v106
    %v111 = vmul.f32 %v72, %v106
    %v112 = vmul.f32 %v75, %v106
    %v113 = vmul.f32 %v78, %v106
    %v114 = vmul.f32 %v81, %v106
    %v115 = vmul.f32 %v84, %v106
    %v116 = vmul.f32 %v87, %v106
    %v117 = vmul.f32 %v90, %v106
    %v118 = vmul.f32 %v93, %v106
    %v119 = vmul.f32 %v96, %v106
    %v120 = vmul.f32 %v99, %v106
    %v121 = vmul.f32 %v102, %v106
    %v122 = vmul.f32 %v105, %v106
    %v123 = vsub.f32 %v41, %v107
    %v124 = vsub.f32 %v42, %v108
    %v125 = vsub.f32 %v43, %v109
    %v126 = vsub.f32 %v44, %v110
    %v127 = vsub.f32 %v45, %v111
    %v128 = vsub.f32 %v46, %v112
    %v129 = vsub.f32 %v47, %v113
    %v130 = vsub.f32 %v48, %v114
    %v131 = vsub.f32 %v49, %v115
    %v132 = vsub.f32 %v50, %v116
    %v133 = vsub.f32 %v51, %v117
    %v134 = vsub.f32 %v52, %v118
    %v135 = vsub.f32 %v53, %v119
    %v136 = vsub.f32 %v54, %v120
    %v137 = vsub.f32 %v55, %v121
    %v138 = vsub.f32 %v56, %v122
    %v139 = vmul.f32 %v123, %v123
    %v140 = vmul.f32 %v124, %v124
    %v141 = vmul.f32 %v125, %v125
    %v142 = vmul.f32 %v126, %v126
    %v143 = vmul.f32 %v127, %v127
    %v144 = vmul.f32 %v128, %v128
    %v145 = vmul.f32 %v129, %v129
    %v146 = vmul.f32 %v130, %v130
    %v147 = vmul.f32 %v131, %v131
    %v148 = vmul.f32 %v132, %v132
    %v149 = vmul.f32 %v133, %v133
    %v150 = vmul.f32 %v134, %v134
    %v151 = vmul.f32 %v135, %v135
    %v152 = vmul.f32 %v136, %v136
    %v153 = vmul.f32 %v137, %v137
    %v154 = vmul.f32 %v138, %v138
    %v155 = vsel %vm57, %v139, 0.0
    %156 = vadd.xlane.f32.xlu0 %v155
    %v157 = vpop.xlane.xlu0 %156
    %v158 = vsel %vm57, %v140, 0.0
    %159 = vadd.xlane.f32.xlu0 %v158
    %v160 = vpop.xlane.xlu0 %159
    %v161 = vsel %vm57, %v141, 0.0
    %162 = vadd.xlane.f32.xlu0 %v161
    %v163 = vpop.xlane.xlu0 %162
    %v164 = vsel %vm57, %v142, 0.0
    %165 = vadd.xlane.f32.xlu0 %v164
    %v166 = vpop.xlane.xlu0 %165
    %v167 = vsel %vm57, %v143, 0.0
    %168 = vadd.xlane.f32.xlu0 %v167
    %v169 = vpop.xlane.xlu0 %168
    %v170 = vsel %vm57, %v144, 0.0
    %171 = vadd.xlane.f32.xlu0 %v170
    %v172 = vpop.xlane.xlu0 %171
    %v173 = vsel %vm57, %v145, 0.0
    %174 = vadd.xlane.f32.xlu0 %v173
    %v175 = vpop.xlane.xlu0 %174
    %v176 = vsel %vm57, %v146, 0.0
    %177 = vadd.xlane.f32.xlu0 %v176
    %v178 = vpop.xlane.xlu0 %177
    %v179 = vsel %vm57, %v147, 0.0
    %180 = vadd.xlane.f32.xlu0 %v179
    %v181 = vpop.xlane.xlu0 %180
    %v182 = vsel %vm57, %v148, 0.0
    %183 = vadd.xlane.f32.xlu0 %v182
    %v184 = vpop.xlane.xlu0 %183
    %v185 = vsel %vm57, %v149, 0.0
    %186 = vadd.xlane.f32.xlu0 %v185
    %v187 = vpop.xlane.xlu0 %186
    %v188 = vsel %vm57, %v150, 0.0
    %189 = vadd.xlane.f32.xlu0 %v188
    %v190 = vpop.xlane.xlu0 %189
    %v191 = vsel %vm57, %v151, 0.0
    %192 = vadd.xlane.f32.xlu0 %v191
    %v193 = vpop.xlane.xlu0 %192
    %v194 = vsel %vm57, %v152, 0.0
    %195 = vadd.xlane.f32.xlu0 %v194
    %v196 = vpop.xlane.xlu0 %195
    %v197 = vsel %vm57, %v153, 0.0
    %198 = vadd.xlane.f32.xlu0 %v197
    %v199 = vpop.xlane.xlu0 %198
    %v200 = vsel %vm57, %v154, 0.0
    %201 = vadd.xlane.f32.xlu0 %v200
    %v202 = vpop.xlane.xlu0 %201
    %v203 = vmul.f32 %v157, %v106
    %v204 = vmul.f32 %v160, %v106
    %v205 = vmul.f32 %v163, %v106
    %v206 = vmul.f32 %v166, %v106
    %v207 = vmul.f32 %v169, %v106
    %v208 = vmul.f32 %v172, %v106
    %v209 = vmul.f32 %v175, %v106
    %v210 = vmul.f32 %v178, %v106
    %v211 = vmul.f32 %v181, %v106
    %v212 = vmul.f32 %v184, %v106
    %v213 = vmul.f32 %v187, %v106
    %v214 = vmul.f32 %v190, %v106
    %v215 = vmul.f32 %v193, %v106
    %v216 = vmul.f32 %v196, %v106
    %v217 = vmul.f32 %v199, %v106
    %v218 = vmul.f32 %v202, %v106
    %v219 = vadd.f32 %v203, 1e-05
    %v220 = vadd.f32 %v204, 1e-05
    %v221 = vadd.f32 %v205, 1e-05
    %v222 = vadd.f32 %v206, 1e-05
    %v223 = vadd.f32 %v207, 1e-05
    %v224 = vadd.f32 %v208, 1e-05
    %v225 = vadd.f32 %v209, 1e-05
    %v226 = vadd.f32 %v210, 1e-05
    %v227 = vadd.f32 %v211, 1e-05
    %v228 = vadd.f32 %v212, 1e-05
    %v229 = vadd.f32 %v213, 1e-05
    %v230 = vadd.f32 %v214, 1e-05
    %v231 = vadd.f32 %v215, 1e-05
    %v232 = vadd.f32 %v216, 1e-05
    %v233 = vadd.f32 %v217, 1e-05
    %v234 = vadd.f32 %v218, 1e-05
    %v235 = vrsqrt.pop %v219
    %v236 = vrsqrt.pop %v220
    %v237 = vrsqrt.pop %v221
    %v238 = vrsqrt.pop %v222
    %v239 = vrsqrt.pop %v223
    %v240 = vrsqrt.pop %v224
    %v241 = vrsqrt.pop %v225
    %v242 = vrsqrt.pop %v226
    %v243 = vrsqrt.pop %v227
    %v244 = vrsqrt.pop %v228
    %v245 = vrsqrt.pop %v229
    %v246 = vrsqrt.pop %v230
    %v247 = vrsqrt.pop %v231
    %v248 = vrsqrt.pop %v232
    %v249 = vrsqrt.pop %v233
    %v250 = vrsqrt.pop %v234
    %v251 = vmul.f32 %v123, %v235
    %v252 = vmul.f32 %v124, %v236
    %v253 = vmul.f32 %v125, %v237
    %v254 = vmul.f32 %v126, %v238
    %v255 = vmul.f32 %v127, %v239
    %v256 = vmul.f32 %v128, %v240
    %v257 = vmul.f32 %v129, %v241
    %v258 = vmul.f32 %v130, %v242
    %v259 = vmul.f32 %v131, %v243
    %v260 = vmul.f32 %v132, %v244
    %v261 = vmul.f32 %v133, %v245
    %v262 = vmul.f32 %v134, %v246
    %v263 = vmul.f32 %v135, %v247
    %v264 = vmul.f32 %v136, %v248
    %v265 = vmul.f32 %v137, %v249
    %v266 = vmul.f32 %v138, %v250
    %v267 = vld [vmem:[%s2] sm:$0x1]
    %v269 = vlaneseq
    %v270 = vshrl.u32 %v269, 7
    %v271 = vsub.s32 0, %v270
    %v272 = vrot.slane %v267, %v271
    %v274 = vmul.f32 %v251, %v272
    %v275 = vmul.f32 %v252, %v272
    %v276 = vmul.f32 %v253, %v272
    %v277 = vmul.f32 %v254, %v272
    %v278 = vmul.f32 %v255, %v272
    %v279 = vmul.f32 %v256, %v272
    %v280 = vmul.f32 %v257, %v272
    %v281 = vmul.f32 %v258, %v272
    %v282 = vmul.f32 %v259, %v272
    %v283 = vmul.f32 %v260, %v272
    %v284 = vmul.f32 %v261, %v272
    %v285 = vmul.f32 %v262, %v272
    %v286 = vmul.f32 %v263, %v272
    %v287 = vmul.f32 %v264, %v272
    %v288 = vmul.f32 %v265, %v272
    %v289 = vmul.f32 %v266, %v272
    %v290 = vld [vmem:[%s3] sm:$0x1]
    %v292 = vlaneseq
    %v293 = vshrl.u32 %v292, 7
    %v294 = vsub.s32 0, %v293
    %v295 = vrot.slane %v290, %v294
    %v297 = vadd.f32 %v274, %v295
    %v298 = vadd.f32 %v275, %v295
    %v299 = vadd.f32 %v276, %v295
    %v300 = vadd.f32 %v277, %v295
    %v301 = vadd.f32 %v278, %v295
    %v302 = vadd.f32 %v279, %v295
    %v303 = vadd.f32 %v280, %v295
    %v304 = vadd.f32 %v281, %v295
    %v305 = vadd.f32 %v282, %v295
    %v306 = vadd.f32 %v283, %v295
    %v307 = vadd.f32 %v284, %v295
    %v308 = vadd.f32 %v285, %v295
    %v309 = vadd.f32 %v286, %v295
    %v310 = vadd.f32 %v287, %v295
    %v311 = vadd.f32 %v288, %v295
    %v312 = vadd.f32 %v289, %v295
    %v313 = vld [vmem:[%s1] sm:$0xf]
    %v314 = vld [vmem:[%s1 + $0x4] sm:$0xf]
    %v315 = vld [vmem:[%s1 + $0x8] sm:$0xf]
    %v316 = vld [vmem:[%s1 + $0xc] sm:$0xf]
    %v317 = vld [vmem:[%s1 + $0x10] sm:$0xf]
    %v318 = vld [vmem:[%s1 + $0x14] sm:$0xf]
    %v319 = vld [vmem:[%s1 + $0x18] sm:$0xf]
    %v320 = vld [vmem:[%s1 + $0x1c] sm:$0xf]
    %v321 = vld [vmem:[%s1 + $0x20] sm:$0xf]
    %v322 = vld [vmem:[%s1 + $0x24] sm:$0xf]
    %v323 = vld [vmem:[%s1 + $0x28] sm:$0xf]
    %v324 = vld [vmem:[%s1 + $0x2c] sm:$0xf]
    %v325 = vld [vmem:[%s1 + $0x30] sm:$0xf]
    %v326 = vld [vmem:[%s1 + $0x34] sm:$0xf]
    %v327 = vld [vmem:[%s1 + $0x38] sm:$0xf]
    %v328 = vld [vmem:[%s1 + $0x3c] sm:$0xf]
    %v329 = vunpack.c.l.bf16 %v313
    %v330 = vunpack.c.l.bf16 %v314
    %v331 = vunpack.c.l.bf16 %v315
    %v332 = vunpack.c.l.bf16 %v316
    %v333 = vunpack.c.l.bf16 %v317
    %v334 = vunpack.c.l.bf16 %v318
    %v335 = vunpack.c.l.bf16 %v319
    %v336 = vunpack.c.l.bf16 %v320
    %v337 = vunpack.c.l.bf16 %v321
    %v338 = vunpack.c.l.bf16 %v322
    %v339 = vunpack.c.l.bf16 %v323
    %v340 = vunpack.c.l.bf16 %v324
    %v341 = vunpack.c.l.bf16 %v325
    %v342 = vunpack.c.l.bf16 %v326
    %v343 = vunpack.c.l.bf16 %v327
    %v344 = vunpack.c.l.bf16 %v328
    %v345 = vmul.f32 %v297, %v329
    %v346 = vmul.f32 %v298, %v330
    %v347 = vmul.f32 %v299, %v331
    %v348 = vmul.f32 %v300, %v332
    %v349 = vmul.f32 %v301, %v333
    %v350 = vmul.f32 %v302, %v334
    %v351 = vmul.f32 %v303, %v335
    %v352 = vmul.f32 %v304, %v336
    %v353 = vmul.f32 %v305, %v337
    %v354 = vmul.f32 %v306, %v338
    %v355 = vmul.f32 %v307, %v339
    %v356 = vmul.f32 %v308, %v340
    %v357 = vmul.f32 %v309, %v341
    %v358 = vmul.f32 %v310, %v342
    %v359 = vmul.f32 %v311, %v343
    %v360 = vmul.f32 %v312, %v344
    %v361 = vpack.c.bf16 %v346, %v345
    %v362 = vpack.c.bf16 %v348, %v347
    %v363 = vpack.c.bf16 %v350, %v349
    %v364 = vpack.c.bf16 %v352, %v351
    %v365 = vpack.c.bf16 %v354, %v353
    %v366 = vpack.c.bf16 %v356, %v355
    %v367 = vpack.c.bf16 %v358, %v357
    %v368 = vpack.c.bf16 %v360, %v359
    %v369 = vld [vmem:[%s4] sm:$0xf]
    %v370 = vld [vmem:[%s4 + $0x4] sm:$0xf]
    %v371 = vld [vmem:[%s4 + $0x8] sm:$0xf]
    %v372 = vld [vmem:[%s4 + $0xc] sm:$0xf]
    %v373 = vld [vmem:[%s5] sm:$0x1]
    %v375 = vlaneseq
    %v376 = vshrl.u32 %v375, 7
    %v377 = vsub.s32 0, %v376
    %v378 = vrot.slane %v373, %v377
    %v384 = vunpack.c.l.b16 %v369
    %v385 = vunpack.c.l.b16 %v370
    %v386 = vunpack.c.l.b16 %v371
    %v387 = vunpack.c.l.b16 %v372
    %v388 = vpack.c.b16 %v385, %v384
    %v389 = vpack.c.b16 %v387, %v386
    %v393 = vsel %vm57, %v361, 0
    %v396 = vsel %vm57, %v362, 0
    %v399 = vsel %vm57, %v363, 0
    %v402 = vsel %vm57, %v364, 0
    %v405 = vsel %vm57, %v365, 0
    %v408 = vsel %vm57, %v366, 0
    %v411 = vsel %vm57, %v367, 0
    %v414 = vsel %vm57, %v368, 0
    %416 = vmatprep.subr.bf16.mxu0 0
    %417 = vmatpush1.bf16.msra.mxu0 %v388
    %418 = vmatprep.subr.bf16.mxu0 0
    %419 = vmatpush1.bf16.msra.mxu0 %v389
    %420 = vmatprep.subr.bf16.mxu0 0
    %421 = vmatpush1.bf16.msra.mxu0 0
    %422 = vmatprep.subr.bf16.mxu0 0
    %423 = vmatpush1.bf16.msra.mxu0 0
    %424 = vmatprep.subr.bf16.mxu0 0
    %425 = vmatpush1.bf16.msra.mxu0 0
    %426 = vmatprep.subr.bf16.mxu0 0
    %427 = vmatpush1.bf16.msra.mxu0 0
    %428 = vmatprep.subr.bf16.mxu0 0
    %429 = vmatpush1.bf16.msra.mxu0 0
    %430 = vmatprep.subr.bf16.mxu0 0
    %431 = vmatpush1.bf16.msra.mxu0 0
    %432 = vmatprep.subr.bf16.mxu0 0
    %433 = vmatpush1.bf16.msra.mxu0 0
    %434 = vmatprep.subr.bf16.mxu0 0
    %435 = vmatpush1.bf16.msra.mxu0 0
    %436 = vmatprep.subr.bf16.mxu0 0
    %437 = vmatpush1.bf16.msra.mxu0 0
    %438 = vmatprep.subr.bf16.mxu0 0
    %439 = vmatpush1.bf16.msra.mxu0 0
    %440 = vmatprep.subr.bf16.mxu0 0
    %441 = vmatpush1.bf16.msra.mxu0 0
    %442 = vmatprep.subr.bf16.mxu0 0
    %443 = vmatpush1.bf16.msra.mxu0 0
    %444 = vmatprep.subr.bf16.mxu0 0
    %445 = vmatpush1.bf16.msra.mxu0 0
    %446 = vmatprep.subr.bf16.mxu0 0
    %447 = vmatpush1.bf16.msra.mxu0 0
    %448 = vmatprep.mubr.bf16.mxu0 0
    %449 = vmatmul.mubr.bf16.gmra.mrb[0].mxu0 %v393
    %v450 = vpop.f32.mrb[0].mxu0
    %v451 = vadd.f32 %v378, %v450
    %v452 = vpop.f32.mrb[0].mxu0
    %v453 = vpop.f32.mrb[0].mxu0
    %v454 = vadd.f32 %v378, %v453
    %v455 = vpop.f32.mrb[0].mxu0
    %456 = vmatprep.mubr.bf16.mxu0 0
    %457 = vmatmul.mubr.bf16.gmra.mrb[0].mxu0 %v396
    %v458 = vpop.f32.mrb[0].mxu0
    %v459 = vadd.f32 %v378, %v458
    %v460 = vpop.f32.mrb[0].mxu0
    %v461 = vpop.f32.mrb[0].mxu0
    %v462 = vadd.f32 %v378, %v461
    %v463 = vpop.f32.mrb[0].mxu0
    %464 = vmatprep.mubr.bf16.mxu0 0
    %465 = vmatmul.mubr.bf16.gmra.mrb[0].mxu0 %v399
    %v466 = vpop.f32.mrb[0].mxu0
    %v467 = vadd.f32 %v378, %v466
    %v468 = vpop.f32.mrb[0].mxu0
    %v469 = vpop.f32.mrb[0].mxu0
    %v470 = vadd.f32 %v378, %v469
    %v471 = vpop.f32.mrb[0].mxu0
    %472 = vmatprep.mubr.bf16.mxu0 0
    %473 = vmatmul.mubr.bf16.gmra.mrb[0].mxu0 %v402
    %v474 = vpop.f32.mrb[0].mxu0
    %v475 = vadd.f32 %v378, %v474
    %v476 = vpop.f32.mrb[0].mxu0
    %v477 = vpop.f32.mrb[0].mxu0
    %v478 = vadd.f32 %v378, %v477
    %v479 = vpop.f32.mrb[0].mxu0
    %480 = vmatprep.mubr.bf16.mxu0 0
    %481 = vmatmul.mubr.bf16.gmra.mrb[0].mxu0 %v405
    %v482 = vpop.f32.mrb[0].mxu0
    %v483 = vadd.f32 %v378, %v482
    %v484 = vpop.f32.mrb[0].mxu0
    %v485 = vpop.f32.mrb[0].mxu0
    %v486 = vadd.f32 %v378, %v485
    %v487 = vpop.f32.mrb[0].mxu0
    %488 = vmatprep.mubr.bf16.mxu0 0
    %489 = vmatmul.mubr.bf16.gmra.mrb[0].mxu0 %v408
    %v490 = vpop.f32.mrb[0].mxu0
    %v491 = vadd.f32 %v378, %v490
    %v492 = vpop.f32.mrb[0].mxu0
    %v493 = vpop.f32.mrb[0].mxu0
    %v494 = vadd.f32 %v378, %v493
    %v495 = vpop.f32.mrb[0].mxu0
    %496 = vmatprep.mubr.bf16.mxu0 0
    %497 = vmatmul.mubr.bf16.gmra.mrb[0].mxu0 %v411
    %v498 = vpop.f32.mrb[0].mxu0
    %v499 = vadd.f32 %v378, %v498
    %v500 = vpop.f32.mrb[0].mxu0
    %v501 = vpop.f32.mrb[0].mxu0
    %v502 = vadd.f32 %v378, %v501
    %v503 = vpop.f32.mrb[0].mxu0
    %504 = vmatprep.mubr.bf16.mxu0 0
    %505 = vmatmul.mubr.bf16.gmra.mrb[0].mxu0 %v414
    %v506 = vpop.f32.mrb[0].mxu0
    %v507 = vadd.f32 %v378, %v506
    %v508 = vpop.f32.mrb[0].mxu0
    %v509 = vpop.f32.mrb[0].mxu0
    %v510 = vadd.f32 %v378, %v509
    %v511 = vpop.f32.mrb[0].mxu0
    %512 = vdwg.mxu0
    %513 = vst.msk [vmem:[#allocation2] sm:$0xff] %vm57, %v451
    %514 = vst.msk [vmem:[#allocation2 + $0x8] sm:$0xff] %vm57, %v454
    %515 = vst.msk [vmem:[#allocation2 + $0x10] sm:$0xff] %vm57, %v459
    %516 = vst.msk [vmem:[#allocation2 + $0x18] sm:$0xff] %vm57, %v462
    %517 = vst.msk [vmem:[#allocation2 + $0x20] sm:$0xff] %vm57, %v467
    %518 = vst.msk [vmem:[#allocation2 + $0x28] sm:$0xff] %vm57, %v470
    %519 = vst.msk [vmem:[#allocation2 + $0x30] sm:$0xff] %vm57, %v475
    %520 = vst.msk [vmem:[#allocation2 + $0x38] sm:$0xff] %vm57, %v478
    %521 = vst.msk [vmem:[#allocation2 + $0x40] sm:$0xff] %vm57, %v483
    %522 = vst.msk [vmem:[#allocation2 + $0x48] sm:$0xff] %vm57, %v486
    %523 = vst.msk [vmem:[#allocation2 + $0x50] sm:$0xff] %vm57, %v491
    %524 = vst.msk [vmem:[#allocation2 + $0x58] sm:$0xff] %vm57, %v494
    %525 = vst.msk [vmem:[#allocation2 + $0x60] sm:$0xff] %vm57, %v499
    %526 = vst.msk [vmem:[#allocation2 + $0x68] sm:$0xff] %vm57, %v502
    %527 = vst.msk [vmem:[#allocation2 + $0x70] sm:$0xff] %vm57, %v507
    %528 = vst.msk [vmem:[#allocation2 + $0x78] sm:$0xff] %vm57, %v510
    // Predicated region
    $region26: #{triangle_multiplicative_forward.5} parent=1 // pred_check
      _
    $region27: #{triangle_multiplicative_forward.5} parent=1 // pred_check_branch
      %530 = sbr.rel (0) target = $region29
    $region28: #{triangle_multiplicative_forward.5} parent=1 // pred_region
      %s532 = ssub.s32 2048, 2048
      %533 = vsyncadd [#allocation3], %s532
      %s534 = sshll.u32 [#allocation2], 4
      %s535 = int_to_ptr.vmem [resolvable:$true] %s534
      %540 = dma.vmem_to_hbm [thread:$0]  %s535, 2048, %s6, [#allocation3], 128, 128, 8
    $region29: #{triangle_multiplicative_forward.5} parent=1 // pred_fallthru
      _
    // Predicated region
    $region30: #{triangle_multiplicative_forward.5} parent=1 // pred_check
      _
    $region31: #{triangle_multiplicative_forward.5} parent=1 // pred_check_branch
      %542 = sbr.rel (0) target = $region33
    $region32: #{triangle_multiplicative_forward.5} parent=1 // pred_region
      %543 = dma.done [#allocation3], 2048
    $region33: #{triangle_multiplicative_forward.5} parent=1 // pred_fallthru
      _
    %544 = vsyncpa [#allocation3], 1

</llo_original>
